<compile_context>
chip_gen: v7x
topology: tpu7x:2x2x1
jax: 0.10.0
libtpu: 0.0.40
codegen_flags: <defaults>
</compile_context>

<pallas_src>
import jax
import jax.numpy as jnp
from jax.experimental import pallas as pl
from jax.experimental.pallas import tpu as pltpu

BN_EPS = 1e-5
LANE = 128


# ------------------------------------------------------------------ kernel --
def _make_resnet_kernel(segments):
    """Build a fused whole-network kernel.

    segments: static tuple of ("linear", relu_flag) or ("resblock", None).
    Kernel refs: x_ref, (w0, b0, w1, b1, ...), out_ref.  A "linear" segment
    consumes one (W, b) pair; a "resblock" consumes two (lin1, lin2) and adds
    the segment input back in (residual).
    """

    def kernel(*refs):
        x_ref, o_ref = refs[0], refs[-1]
        wb = refs[1:-1]
        idx = 0

        def dense(h, relu):
            nonlocal idx
            w = wb[idx][...]        # bf16 [K, N]  (BN scale folded in)
            b = wb[idx + 1][...]    # f32  [1, N]  (bias + BN shift folded)
            idx += 2
            y = jnp.dot(h.astype(w.dtype), w,
                        preferred_element_type=jnp.float32) + b
            return jnp.maximum(y, 0.0) if relu else y

        h = x_ref[...].astype(jnp.float32)
        for seg in segments:                      # static Python loop
            if seg[0] == "linear":
                h = dense(h, seg[1])
            else:                                 # ResidualBlock
                r = h
                h = dense(h, True)                # Linear+BN+ReLU (folded)
                h = dense(h, True)                # Linear+BN+ReLU (folded)
                h = r + h
        o_ref[...] = h.astype(o_ref.dtype)

    return kernel


# ----------------------------------------------------------------- wrapper --
def resnet_forward(net, x):
    """Run the whole ResNet in one pallas_call; returns [B, output_dim] f32."""
    segments = net["segments"]
    ws, bs = net["weights"], net["biases"]
    out_dim = net["out_dim"]
    n_pad = ws[-1].shape[1]                      # lane-dense padded width

    B, K0 = x.shape
    # Batch-row blocks: one block at small batch; 128-row blocks (marked
    # "parallel") at larger batch so v7x can shard across its 2 TensorCores.
    bm = B if B <= 128 else 128
    bm = max(8, ((bm + 7) // 8) * 8)
    Bp = ((B + bm - 1) // bm) * bm
    if Bp != B:
        x = jnp.pad(x, ((0, Bp - B), (0, 0)))
    grid = (Bp // bm,)

    in_specs = [pl.BlockSpec((bm, K0), lambda i: (i, 0))]     # x batch block
    args = [x]
    for w, b in zip(ws, bs):
        kk, nn = w.shape
        in_specs.append(pl.BlockSpec((kk, nn), lambda i: (0, 0)))  # full W
        in_specs.append(pl.BlockSpec((1, nn), lambda i: (0, 0)))   # full b
        args.extend([w, b])

    out = pl.pallas_call(
        _make_resnet_kernel(segments),
        out_shape=jax.ShapeDtypeStruct((Bp, n_pad), jnp.float32),
        grid=grid,
        in_specs=in_specs,
        out_specs=pl.BlockSpec((bm, n_pad), lambda i: (i, 0)),
        compiler_params=pltpu.CompilerParams(
            dimension_semantics=("parallel",)),
    )(*args)
    return out[:B, :out_dim]


# ------------------------------------------------------------ params / fold --
def init_linear(key, in_d, out_d):
    kw, kb = jax.random.split(key)
    bound = 1.0 / (in_d ** 0.5)
    w = jax.random.uniform(kw, (in_d, out_d), jnp.float32, -bound, bound)
    b = jax.random.uniform(kb, (out_d,), jnp.float32, -bound, bound)
    return w, b


def init_bn(key, d):
    k1, k2, k3, k4 = jax.random.split(key, 4)
    gamma = jax.random.uniform(k1, (d,), jnp.float32, 0.5, 1.5)
    beta = jax.random.uniform(k2, (d,), jnp.float32, -0.5, 0.5)
    mean = jax.random.uniform(k3, (d,), jnp.float32, -0.1, 0.1)
    var = jax.random.uniform(k4, (d,), jnp.float32, 0.5, 1.5)
    return gamma, beta, mean, var


def fold_linear_bn(w, b, gamma, beta, mean, var):
    """Eval-mode BN folded into the preceding Linear (exact in f32)."""
    scale = gamma / jnp.sqrt(var + BN_EPS)
    shift = beta - mean * scale
    return w * scale[None, :], b * scale + shift


def build_resnet(key, input_dim, depth, output_dim,
                 hidden_dim=256, final_hidden=128):
    """Mirrors ResNet.__init__ (hidden sizes 4096/256 scaled to 256/128 for a
    small self-contained demo). Returns BN-folded, bf16-cast parameters."""
    segments, weights, biases = [], [], []
    keys = iter(jax.random.split(key, 8 * depth + 8))
    in_d, h = input_dim, hidden_dim
    for i in range(depth - 1):
        w, b = init_linear(next(keys), in_d, h)           # Linear(in_d, h)
        weights.append(w); biases.append(b)
        segments.append(("linear", False))
        # ResidualBlock(h): [Dropout(id), Linear, BN, ReLU] x 2, then +x
        for _ in range(2):
            w, b = init_linear(next(keys), h, h)
            w, b = fold_linear_bn(w, b, *init_bn(next(keys), h))
            weights.append(w); biases.append(b)
        segments.append(("resblock", None))
        in_d = h
        if i % 2 == 0 and i > 0:
            h = h // 2
    # head: Linear(in_d, final_hidden) -> ReLU -> Linear(final_hidden, out)
    w, b = init_linear(next(keys), in_d, final_hidden)
    weights.append(w); biases.append(b)
    segments.append(("linear", True))
    w, b = init_linear(next(keys), final_hidden, output_dim)
    weights.append(w); biases.append(b)
    segments.append(("linear", False))

    # Lane-dense output: zero-pad final output features up to a multiple of 128.
    n_pad = ((output_dim + LANE - 1) // LANE) * LANE
    weights[-1] = jnp.pad(weights[-1], ((0, 0), (0, n_pad - output_dim)))
    biases[-1] = jnp.pad(biases[-1], ((0, n_pad - output_dim),))

    # bf16 weights (MXU native), f32 biases laid out [1, N].
    weights = [w.astype(jnp.bfloat16) for w in weights]
    biases = [b.astype(jnp.float32).reshape(1, -1) for b in biases]
    return dict(segments=tuple(segments), weights=weights, biases=biases,
                out_dim=output_dim)


# --------------------------------------------------------------- reference --
def ref_forward(net, x):
    """Plain-JAX reference using the same prepared (folded, bf16) params."""
    segments, ws, bs = net["segments"], net["weights"], net["biases"]
    idx = 0

    def dense(h, relu):
        nonlocal idx
        w, b = ws[idx], bs[idx]
        idx += 1
        y = jnp.dot(h.astype(w.dtype), w,
                    preferred_element_type=jnp.float32) + b
        return jnp.maximum(y, 0.0) if relu else y

    h = x.astype(jnp.float32)
    for seg in segments:
        if seg[0] == "linear":
            h = dense(h, seg[1])
        else:
            r = h
            h = dense(h, True)
            h = dense(h, True)
            h = r + h
    return h[:, :net["out_dim"]]


# --------------------------------------------------------------------- main --
if __name__ == "__main__":
    key = jax.random.PRNGKey(0)
    k_params, k_x = jax.random.split(key)

    batch, input_dim, depth, output_dim = 8, 32, 3, 8
    net = build_resnet(k_params, input_dim, depth, output_dim)

    x = jax.random.normal(k_x, (batch, input_dim), jnp.float32)

    out = jax.block_until_ready(resnet_forward(net, x))
    ref = jax.block_until_ready(ref_forward(net, x))

    assert out.shape == (batch, output_dim)
    assert jnp.allclose(out, ref, rtol=1e-3, atol=1e-3), (
        f"max abs err {jnp.max(jnp.abs(out - ref))}")

    print("KERNEL_OK")
</pallas_src>

<mosaic_0001>
module attributes {stable_mosaic.version = 11 : i64} {
  func.func @kernel(%arg0: i32, %arg1: memref<8x32xf32, #tpu.memory_space<vmem>>, %arg2: memref<32x256xbf16, #tpu.memory_space<vmem>>, %arg3: memref<1x256xf32, #tpu.memory_space<vmem>>, %arg4: memref<256x256xbf16, #tpu.memory_space<vmem>>, %arg5: memref<1x256xf32, #tpu.memory_space<vmem>>, %arg6: memref<256x256xbf16, #tpu.memory_space<vmem>>, %arg7: memref<1x256xf32, #tpu.memory_space<vmem>>, %arg8: memref<256x256xbf16, #tpu.memory_space<vmem>>, %arg9: memref<1x256xf32, #tpu.memory_space<vmem>>, %arg10: memref<256x256xbf16, #tpu.memory_space<vmem>>, %arg11: memref<1x256xf32, #tpu.memory_space<vmem>>, %arg12: memref<256x256xbf16, #tpu.memory_space<vmem>>, %arg13: memref<1x256xf32, #tpu.memory_space<vmem>>, %arg14: memref<256x128xbf16, #tpu.memory_space<vmem>>, %arg15: memref<1x128xf32, #tpu.memory_space<vmem>>, %arg16: memref<128x128xbf16, #tpu.memory_space<vmem>>, %arg17: memref<1x128xf32, #tpu.memory_space<vmem>>, %arg18: memref<8x128xf32, #tpu.memory_space<vmem>>) attributes {dimension_semantics = [#tpu.dimension_semantics<parallel>], iteration_bounds = array<i64: 1>, scalar_prefetch = 0 : i64, scratch_operands = 0 : i64, tpu.core_type = #tpu.core_type<tc>, window_params = [{transform_indices = @transform_0, window_bounds = array<i64: 8, 32>}, {pipeline_mode = #tpu.pipeline_mode<synchronous>, transform_indices = @transform_1, window_bounds = array<i64: 32, 256>}, {pipeline_mode = #tpu.pipeline_mode<synchronous>, transform_indices = @transform_2, window_bounds = array<i64: 1, 256>}, {pipeline_mode = #tpu.pipeline_mode<synchronous>, transform_indices = @transform_3, window_bounds = array<i64: 256, 256>}, {pipeline_mode = #tpu.pipeline_mode<synchronous>, transform_indices = @transform_4, window_bounds = array<i64: 1, 256>}, {pipeline_mode = #tpu.pipeline_mode<synchronous>, transform_indices = @transform_5, window_bounds = array<i64: 256, 256>}, {pipeline_mode = #tpu.pipeline_mode<synchronous>, transform_indices = @transform_6, window_bounds = array<i64: 1, 256>}, {pipeline_mode = #tpu.pipeline_mode<synchronous>, transform_indices = @transform_7, window_bounds = array<i64: 256, 256>}, {pipeline_mode = #tpu.pipeline_mode<synchronous>, transform_indices = @transform_8, window_bounds = array<i64: 1, 256>}, {pipeline_mode = #tpu.pipeline_mode<synchronous>, transform_indices = @transform_9, window_bounds = array<i64: 256, 256>}, {pipeline_mode = #tpu.pipeline_mode<synchronous>, transform_indices = @transform_10, window_bounds = array<i64: 1, 256>}, {pipeline_mode = #tpu.pipeline_mode<synchronous>, transform_indices = @transform_11, window_bounds = array<i64: 256, 256>}, {pipeline_mode = #tpu.pipeline_mode<synchronous>, transform_indices = @transform_12, window_bounds = array<i64: 1, 256>}, {pipeline_mode = #tpu.pipeline_mode<synchronous>, transform_indices = @transform_13, window_bounds = array<i64: 256, 128>}, {pipeline_mode = #tpu.pipeline_mode<synchronous>, transform_indices = @transform_14, window_bounds = array<i64: 1, 128>}, {pipeline_mode = #tpu.pipeline_mode<synchronous>, transform_indices = @transform_15, window_bounds = array<i64: 128, 128>}, {pipeline_mode = #tpu.pipeline_mode<synchronous>, transform_indices = @transform_16, window_bounds = array<i64: 1, 128>}, {transform_indices = @transform_17, window_bounds = array<i64: 8, 128>}]} {
    %c0 = arith.constant 0 : index
    %c0_0 = arith.constant 0 : index
    %0 = vector.load %arg1[%c0, %c0_0] : memref<8x32xf32, #tpu.memory_space<vmem>>, vector<8x32xf32>
    %c0_1 = arith.constant 0 : index
    %c0_2 = arith.constant 0 : index
    %1 = vector.load %arg2[%c0_1, %c0_2] : memref<32x256xbf16, #tpu.memory_space<vmem>>, vector<32x256xbf16>
    %c0_3 = arith.constant 0 : index
    %c0_4 = arith.constant 0 : index
    %2 = vector.load %arg3[%c0_3, %c0_4] : memref<1x256xf32, #tpu.memory_space<vmem>>, vector<1x256xf32>
    %3 = arith.truncf %0 : vector<8x32xf32> to vector<8x32xbf16>
    %cst = arith.constant dense<0.000000e+00> : vector<8x256xf32>
    %4 = tpu.matmul %3, %1, %cst {dimension_numbers = #tpu.dot_dimension_numbers<[1], [0], [0], [1], [0, 0, 1, 1], [], []>} : vector<8x32xbf16>, vector<32x256xbf16>, vector<8x256xf32> -> vector<8x256xf32>
    %5 = vector.broadcast %2 : vector<1x256xf32> to vector<8x256xf32>
    %6 = arith.addf %4, %5 : vector<8x256xf32>
    %c0_5 = arith.constant 0 : index
    %c0_6 = arith.constant 0 : index
    %7 = vector.load %arg4[%c0_5, %c0_6] : memref<256x256xbf16, #tpu.memory_space<vmem>>, vector<256x256xbf16>
    %c0_7 = arith.constant 0 : index
    %c0_8 = arith.constant 0 : index
    %8 = vector.load %arg5[%c0_7, %c0_8] : memref<1x256xf32, #tpu.memory_space<vmem>>, vector<1x256xf32>
    %9 = arith.truncf %6 : vector<8x256xf32> to vector<8x256xbf16>
    %cst_9 = arith.constant dense<0.000000e+00> : vector<8x256xf32>
    %10 = tpu.matmul %9, %7, %cst_9 {dimension_numbers = #tpu.dot_dimension_numbers<[1], [0], [0], [1], [0, 0, 1, 1], [], []>} : vector<8x256xbf16>, vector<256x256xbf16>, vector<8x256xf32> -> vector<8x256xf32>
    %11 = vector.broadcast %8 : vector<1x256xf32> to vector<8x256xf32>
    %12 = arith.addf %10, %11 : vector<8x256xf32>
    %cst_10 = arith.constant 0.000000e+00 : f32
    %13 = vector.broadcast %cst_10 : f32 to vector<8x256xf32>
    %14 = arith.maximumf %12, %13 : vector<8x256xf32>
    %c0_11 = arith.constant 0 : index
    %c0_12 = arith.constant 0 : index
    %15 = vector.load %arg6[%c0_11, %c0_12] : memref<256x256xbf16, #tpu.memory_space<vmem>>, vector<256x256xbf16>
    %c0_13 = arith.constant 0 : index
    %c0_14 = arith.constant 0 : index
    %16 = vector.load %arg7[%c0_13, %c0_14] : memref<1x256xf32, #tpu.memory_space<vmem>>, vector<1x256xf32>
    %17 = arith.truncf %14 : vector<8x256xf32> to vector<8x256xbf16>
    %cst_15 = arith.constant dense<0.000000e+00> : vector<8x256xf32>
    %18 = tpu.matmul %17, %15, %cst_15 {dimension_numbers = #tpu.dot_dimension_numbers<[1], [0], [0], [1], [0, 0, 1, 1], [], []>} : vector<8x256xbf16>, vector<256x256xbf16>, vector<8x256xf32> -> vector<8x256xf32>
    %19 = vector.broadcast %16 : vector<1x256xf32> to vector<8x256xf32>
    %20 = arith.addf %18, %19 : vector<8x256xf32>
    %cst_16 = arith.constant 0.000000e+00 : f32
    %21 = vector.broadcast %cst_16 : f32 to vector<8x256xf32>
    %22 = arith.maximumf %20, %21 : vector<8x256xf32>
    %23 = arith.addf %6, %22 : vector<8x256xf32>
    %c0_17 = arith.constant 0 : index
    %c0_18 = arith.constant 0 : index
    %24 = vector.load %arg8[%c0_17, %c0_18] : memref<256x256xbf16, #tpu.memory_space<vmem>>, vector<256x256xbf16>
    %c0_19 = arith.constant 0 : index
    %c0_20 = arith.constant 0 : index
    %25 = vector.load %arg9[%c0_19, %c0_20] : memref<1x256xf32, #tpu.memory_space<vmem>>, vector<1x256xf32>
    %26 = arith.truncf %23 : vector<8x256xf32> to vector<8x256xbf16>
    %cst_21 = arith.constant dense<0.000000e+00> : vector<8x256xf32>
    %27 = tpu.matmul %26, %24, %cst_21 {dimension_numbers = #tpu.dot_dimension_numbers<[1], [0], [0], [1], [0, 0, 1, 1], [], []>} : vector<8x256xbf16>, vector<256x256xbf16>, vector<8x256xf32> -> vector<8x256xf32>
    %28 = vector.broadcast %25 : vector<1x256xf32> to vector<8x256xf32>
    %29 = arith.addf %27, %28 : vector<8x256xf32>
    %c0_22 = arith.constant 0 : index
    %c0_23 = arith.constant 0 : index
    %30 = vector.load %arg10[%c0_22, %c0_23] : memref<256x256xbf16, #tpu.memory_space<vmem>>, vector<256x256xbf16>
    %c0_24 = arith.constant 0 : index
    %c0_25 = arith.constant 0 : index
    %31 = vector.load %arg11[%c0_24, %c0_25] : memref<1x256xf32, #tpu.memory_space<vmem>>, vector<1x256xf32>
    %32 = arith.truncf %29 : vector<8x256xf32> to vector<8x256xbf16>
    %cst_26 = arith.constant dense<0.000000e+00> : vector<8x256xf32>
    %33 = tpu.matmul %32, %30, %cst_26 {dimension_numbers = #tpu.dot_dimension_numbers<[1], [0], [0], [1], [0, 0, 1, 1], [], []>} : vector<8x256xbf16>, vector<256x256xbf16>, vector<8x256xf32> -> vector<8x256xf32>
    %34 = vector.broadcast %31 : vector<1x256xf32> to vector<8x256xf32>
    %35 = arith.addf %33, %34 : vector<8x256xf32>
    %cst_27 = arith.constant 0.000000e+00 : f32
    %36 = vector.broadcast %cst_27 : f32 to vector<8x256xf32>
    %37 = arith.maximumf %35, %36 : vector<8x256xf32>
    %c0_28 = arith.constant 0 : index
    %c0_29 = arith.constant 0 : index
    %38 = vector.load %arg12[%c0_28, %c0_29] : memref<256x256xbf16, #tpu.memory_space<vmem>>, vector<256x256xbf16>
    %c0_30 = arith.constant 0 : index
    %c0_31 = arith.constant 0 : index
    %39 = vector.load %arg13[%c0_30, %c0_31] : memref<1x256xf32, #tpu.memory_space<vmem>>, vector<1x256xf32>
    %40 = arith.truncf %37 : vector<8x256xf32> to vector<8x256xbf16>
    %cst_32 = arith.constant dense<0.000000e+00> : vector<8x256xf32>
    %41 = tpu.matmul %40, %38, %cst_32 {dimension_numbers = #tpu.dot_dimension_numbers<[1], [0], [0], [1], [0, 0, 1, 1], [], []>} : vector<8x256xbf16>, vector<256x256xbf16>, vector<8x256xf32> -> vector<8x256xf32>
    %42 = vector.broadcast %39 : vector<1x256xf32> to vector<8x256xf32>
    %43 = arith.addf %41, %42 : vector<8x256xf32>
    %cst_33 = arith.constant 0.000000e+00 : f32
    %44 = vector.broadcast %cst_33 : f32 to vector<8x256xf32>
    %45 = arith.maximumf %43, %44 : vector<8x256xf32>
    %46 = arith.addf %29, %45 : vector<8x256xf32>
    %c0_34 = arith.constant 0 : index
    %c0_35 = arith.constant 0 : index
    %47 = vector.load %arg14[%c0_34, %c0_35] : memref<256x128xbf16, #tpu.memory_space<vmem>>, vector<256x128xbf16>
    %c0_36 = arith.constant 0 : index
    %c0_37 = arith.constant 0 : index
    %48 = vector.load %arg15[%c0_36, %c0_37] : memref<1x128xf32, #tpu.memory_space<vmem>>, vector<1x128xf32>
    %49 = arith.truncf %46 : vector<8x256xf32> to vector<8x256xbf16>
    %cst_38 = arith.constant dense<0.000000e+00> : vector<8x128xf32>
    %50 = tpu.matmul %49, %47, %cst_38 {dimension_numbers = #tpu.dot_dimension_numbers<[1], [0], [0], [1], [0, 0, 1, 1], [], []>} : vector<8x256xbf16>, vector<256x128xbf16>, vector<8x128xf32> -> vector<8x128xf32>
    %51 = vector.broadcast %48 : vector<1x128xf32> to vector<8x128xf32>
    %52 = arith.addf %50, %51 : vector<8x128xf32>
    %cst_39 = arith.constant 0.000000e+00 : f32
    %53 = vector.broadcast %cst_39 : f32 to vector<8x128xf32>
    %54 = arith.maximumf %52, %53 : vector<8x128xf32>
    %c0_40 = arith.constant 0 : index
    %c0_41 = arith.constant 0 : index
    %55 = vector.load %arg16[%c0_40, %c0_41] : memref<128x128xbf16, #tpu.memory_space<vmem>>, vector<128x128xbf16>
    %c0_42 = arith.constant 0 : index
    %c0_43 = arith.constant 0 : index
    %56 = vector.load %arg17[%c0_42, %c0_43] : memref<1x128xf32, #tpu.memory_space<vmem>>, vector<1x128xf32>
    %57 = arith.truncf %54 : vector<8x128xf32> to vector<8x128xbf16>
    %cst_44 = arith.constant dense<0.000000e+00> : vector<8x128xf32>
    %58 = tpu.matmul %57, %55, %cst_44 {dimension_numbers = #tpu.dot_dimension_numbers<[1], [0], [0], [1], [0, 0, 1, 1], [], []>} : vector<8x128xbf16>, vector<128x128xbf16>, vector<8x128xf32> -> vector<8x128xf32>
    %59 = vector.broadcast %56 : vector<1x128xf32> to vector<8x128xf32>
    %60 = arith.addf %58, %59 : vector<8x128xf32>
    %c0_45 = arith.constant 0 : index
    %c0_46 = arith.constant 0 : index
    %61 = vector.load %arg18[%c0_45, %c0_46] : memref<8x128xf32, #tpu.memory_space<vmem>>, vector<8x128xf32>
    tpu.vector_store %arg18[%c0_45, %c0_46], %60 {strides = array<i32>} : memref<8x128xf32, #tpu.memory_space<vmem>>, vector<8x128xf32>,
    return
  }
  func.func @transform_0(%arg0: i32) -> (i32, i32) {
    %c0_i32 = arith.constant 0 : i32
    %c0_i32_0 = arith.constant 0 : i32
    return %arg0, %c0_i32 : i32, i32
  }
  func.func @transform_1(%arg0: i32) -> (i32, i32) {
    %c0_i32 = arith.constant 0 : i32
    %c0_i32_0 = arith.constant 0 : i32
    %c0_i32_1 = arith.constant 0 : i32
    return %c0_i32, %c0_i32_0 : i32, i32
  }
  func.func @transform_2(%arg0: i32) -> (i32, i32) {
    %c0_i32 = arith.constant 0 : i32
    %c0_i32_0 = arith.constant 0 : i32
    %c0_i32_1 = arith.constant 0 : i32
    return %c0_i32, %c0_i32_0 : i32, i32
  }
  func.func @transform_3(%arg0: i32) -> (i32, i32) {
    %c0_i32 = arith.constant 0 : i32
    %c0_i32_0 = arith.constant 0 : i32
    %c0_i32_1 = arith.constant 0 : i32
    return %c0_i32, %c0_i32_0 : i32, i32
  }
  func.func @transform_4(%arg0: i32) -> (i32, i32) {
    %c0_i32 = arith.constant 0 : i32
    %c0_i32_0 = arith.constant 0 : i32
    %c0_i32_1 = arith.constant 0 : i32
    return %c0_i32, %c0_i32_0 : i32, i32
  }
  func.func @transform_5(%arg0: i32) -> (i32, i32) {
    %c0_i32 = arith.constant 0 : i32
    %c0_i32_0 = arith.constant 0 : i32
    %c0_i32_1 = arith.constant 0 : i32
    return %c0_i32, %c0_i32_0 : i32, i32
  }
  func.func @transform_6(%arg0: i32) -> (i32, i32) {
    %c0_i32 = arith.constant 0 : i32
    %c0_i32_0 = arith.constant 0 : i32
    %c0_i32_1 = arith.constant 0 : i32
    return %c0_i32, %c0_i32_0 : i32, i32
  }
  func.func @transform_7(%arg0: i32) -> (i32, i32) {
    %c0_i32 = arith.constant 0 : i32
    %c0_i32_0 = arith.constant 0 : i32
    %c0_i32_1 = arith.constant 0 : i32
    return %c0_i32, %c0_i32_0 : i32, i32
  }
  func.func @transform_8(%arg0: i32) -> (i32, i32) {
    %c0_i32 = arith.constant 0 : i32
    %c0_i32_0 = arith.constant 0 : i32
    %c0_i32_1 = arith.constant 0 : i32
    return %c0_i32, %c0_i32_0 : i32, i32
  }
  func.func @transform_9(%arg0: i32) -> (i32, i32) {
    %c0_i32 = arith.constant 0 : i32
    %c0_i32_0 = arith.constant 0 : i32
    %c0_i32_1 = arith.constant 0 : i32
    return %c0_i32, %c0_i32_0 : i32, i32
  }
  func.func @transform_10(%arg0: i32) -> (i32, i32) {
    %c0_i32 = arith.constant 0 : i32
    %c0_i32_0 = arith.constant 0 : i32
    %c0_i32_1 = arith.constant 0 : i32
    return %c0_i32, %c0_i32_0 : i32, i32
  }
  func.func @transform_11(%arg0: i32) -> (i32, i32) {
    %c0_i32 = arith.constant 0 : i32
    %c0_i32_0 = arith.constant 0 : i32
    %c0_i32_1 = arith.constant 0 : i32
    return %c0_i32, %c0_i32_0 : i32, i32
  }
  func.func @transform_12(%arg0: i32) -> (i32, i32) {
    %c0_i32 = arith.constant 0 : i32
    %c0_i32_0 = arith.constant 0 : i32
    %c0_i32_1 = arith.constant 0 : i32
    return %c0_i32, %c0_i32_0 : i32, i32
  }
  func.func @transform_13(%arg0: i32) -> (i32, i32) {
    %c0_i32 = arith.constant 0 : i32
    %c0_i32_0 = arith.constant 0 : i32
    %c0_i32_1 = arith.constant 0 : i32
    return %c0_i32, %c0_i32_0 : i32, i32
  }
  func.func @transform_14(%arg0: i32) -> (i32, i32) {
    %c0_i32 = arith.constant 0 : i32
    %c0_i32_0 = arith.constant 0 : i32
    %c0_i32_1 = arith.constant 0 : i32
    return %c0_i32, %c0_i32_0 : i32, i32
  }
  func.func @transform_15(%arg0: i32) -> (i32, i32) {
    %c0_i32 = arith.constant 0 : i32
    %c0_i32_0 = arith.constant 0 : i32
    %c0_i32_1 = arith.constant 0 : i32
    return %c0_i32, %c0_i32_0 : i32, i32
  }
  func.func @transform_16(%arg0: i32) -> (i32, i32) {
    %c0_i32 = arith.constant 0 : i32
    %c0_i32_0 = arith.constant 0 : i32
    %c0_i32_1 = arith.constant 0 : i32
    return %c0_i32, %c0_i32_0 : i32, i32
  }
  func.func @transform_17(%arg0: i32) -> (i32, i32) {
    %c0_i32 = arith.constant 0 : i32
    %c0_i32_0 = arith.constant 0 : i32
    return %arg0, %c0_i32 : i32, i32
  }
}

</mosaic_0001>

<llo_original>
// kernel: tpu_custom_call.1
$region0: #{tpu_custom_call.1}
  #allocation0 [shape = 'u32[]', space=smem, size = 0x4, offset = 0x4, fixed_abs, tag = 'smem constant byte address 0x4 - core index']
  #allocation1 [shape = 'u32[144,128]{1,0:T(1,128)}', space=vmem, size = 0x12000, scoped, tag = 'internal scratch']
  %s0 = inlined_call_operand.hbm [shape: f32[8,32], index: 0, kind: input, shape index: {}]
  %s1 = inlined_call_operand.hbm [shape: bf16[32,256], index: 1, kind: input, shape index: {}]
  %s2 = inlined_call_operand.vmem [shape: f32[1,256], index: 2, kind: input, shape index: {}]
  %s3 = inlined_call_operand.hbm [shape: bf16[256,256], index: 3, kind: input, shape index: {}]
  %s4 = inlined_call_operand.vmem [shape: f32[1,256], index: 4, kind: input, shape index: {}]
  %s5 = inlined_call_operand.hbm [shape: bf16[256,256], index: 5, kind: input, shape index: {}]
  %s6 = inlined_call_operand.vmem [shape: f32[1,256], index: 6, kind: input, shape index: {}]
  %s7 = inlined_call_operand.hbm [shape: bf16[256,256], index: 7, kind: input, shape index: {}]
  %s8 = inlined_call_operand.vmem [shape: f32[1,256], index: 8, kind: input, shape index: {}]
  %s9 = inlined_call_operand.hbm [shape: bf16[256,256], index: 9, kind: input, shape index: {}]
  %s10 = inlined_call_operand.vmem [shape: f32[1,256], index: 10, kind: input, shape index: {}]
  %s11 = inlined_call_operand.hbm [shape: bf16[256,256], index: 11, kind: input, shape index: {}]
  %s12 = inlined_call_operand.vmem [shape: f32[1,256], index: 12, kind: input, shape index: {}]
  %s13 = inlined_call_operand.hbm [shape: bf16[256,128], index: 13, kind: input, shape index: {}]
  %s14 = inlined_call_operand.vmem [shape: f32[1,128], index: 14, kind: input, shape index: {}]
  %s15 = inlined_call_operand.hbm [shape: bf16[128,128], index: 15, kind: input, shape index: {}]
  %s16 = inlined_call_operand.vmem [shape: f32[1,128], index: 16, kind: input, shape index: {}]
  %s17 = inlined_call_operand.hbm [shape: f32[8,128], index: 17, kind: output, shape index: {}]
  %s18 = sld [smem:[#allocation0]]
  $region114: #{tpu_custom_call.1} parent=0
    _
  %s20 = ssub.s32 1, %s18
  %s21 = scalar_select 0, %s20, %s18
  $region1: #{tpu_custom_call.1} parent=0
    #allocation2 [shape = 'u8[4096]{0}', space=vmem, size = 0x1000, scoped, tag = 'input window, operand 0, single buffered']
    #allocation3 [shape = 's32[1]{0}', space=sflag, size = 0x4, scoped, tag = 'scoped memory for tpu_custom_call.1']
    #allocation4 [shape = 's32[1]{0}', space=sflag, size = 0x4, scoped, tag = 'scoped memory for tpu_custom_call.1']
    #allocation5 [shape = 'u8[16384]{0}', space=vmem, size = 0x4000, scoped, tag = 'input window, operand 1, single buffered']
    #allocation6 [shape = 's32[1]{0}', space=sflag, size = 0x4, scoped, tag = 'scoped memory for tpu_custom_call.1']
    #allocation7 [shape = 'u8[131072]{0}', space=vmem, size = 0x20000, scoped, tag = 'input window, operand 3, single buffered']
    #allocation8 [shape = 'u8[131072]{0}', space=vmem, size = 0x20000, scoped, tag = 'input window, operand 5, single buffered']
    #allocation9 [shape = 's32[1]{0}', space=sflag, size = 0x4, scoped, tag = 'scoped memory for tpu_custom_call.1']
    #allocation10 [shape = 'u8[131072]{0}', space=vmem, size = 0x20000, scoped, tag = 'input window, operand 7, single buffered']
    #allocation11 [shape = 'u8[131072]{0}', space=vmem, size = 0x20000, scoped, tag = 'input window, operand 9, single buffered']
    #allocation12 [shape = 's32[1]{0}', space=sflag, size = 0x4, scoped, tag = 'scoped memory for tpu_custom_call.1']
    #allocation13 [shape = 'u8[131072]{0}', space=vmem, size = 0x20000, scoped, tag = 'input window, operand 11, single buffered']
    #allocation14 [shape = 'u8[65536]{0}', space=vmem, size = 0x10000, scoped, tag = 'input window, operand 13, single buffered']
    #allocation15 [shape = 's32[1]{0}', space=sflag, size = 0x4, scoped, tag = 'scoped memory for tpu_custom_call.1']
    #allocation16 [shape = 'u8[32768]{0}', space=vmem, size = 0x8000, scoped, tag = 'input window, operand 15, single buffered']
    #allocation17 [shape = 'u8[4096]{0}', space=vmem, size = 0x1000, scoped, tag = 'output window, operand 0, single buffered']
    %22 = vsyncpa [#allocation3], 0
    %23 = vsyncpa [#allocation6], 0
    %24 = vsyncpa [#allocation9], 0
    %25 = vsyncpa [#allocation12], 0
    %26 = vsyncpa [#allocation15], 0
    %27 = vsyncpa [#allocation4], 0
    // Predicated region
    $region2: #{tpu_custom_call.1} parent=1 // pred_check
      _
    $region3: #{tpu_custom_call.1} parent=1 // pred_check_branch
      %29 = sbr.rel (0) target = $region5
    $region4: #{tpu_custom_call.1} parent=1 // pred_region
      %s31 = ssub.s32 128, 128
      %32 = vsyncadd [#allocation3], %s31
      %s34 = sshll.u32 [#allocation2], 4
      %s35 = int_to_ptr.vmem [resolvable:$true] %s34
      %37 = dma.hbm_to_vmem [thread:$0]  %s0, 128, %s35, [#allocation3]
    $region5: #{tpu_custom_call.1} parent=1 // pred_fallthru
      _
    // Predicated region
    $region6: #{tpu_custom_call.1} parent=1 // pred_check
      _
    $region7: #{tpu_custom_call.1} parent=1 // pred_check_branch
      %39 = sbr.rel (0) target = $region9
    $region8: #{tpu_custom_call.1} parent=1 // pred_region
      %s41 = ssub.s32 512, 512
      %42 = vsyncadd [#allocation6], %s41
      %s43 = sshll.u32 [#allocation5], 4
      %s44 = int_to_ptr.vmem [resolvable:$true] %s43
      %49 = dma.hbm_to_vmem [thread:$0]  %s1, 512, %s44, [#allocation6], 128, 128, 8
    $region9: #{tpu_custom_call.1} parent=1 // pred_fallthru
      _
    // Predicated region
    $region10: #{tpu_custom_call.1} parent=1 // pred_check
      _
    $region11: #{tpu_custom_call.1} parent=1 // pred_check_branch
      %51 = sbr.rel (0) target = $region13
    $region12: #{tpu_custom_call.1} parent=1 // pred_region
      _
    $region13: #{tpu_custom_call.1} parent=1 // pred_fallthru
      _
    // Predicated region
    $region14: #{tpu_custom_call.1} parent=1 // pred_check
      _
    $region15: #{tpu_custom_call.1} parent=1 // pred_check_branch
      %53 = sbr.rel (0) target = $region17
    $region16: #{tpu_custom_call.1} parent=1 // pred_region
      %s55 = ssub.s32 4096, 4096
      %56 = vsyncadd [#allocation6], %s55
      %s57 = sshll.u32 [#allocation7], 4
      %s58 = int_to_ptr.vmem [resolvable:$true] %s57
      %63 = dma.hbm_to_vmem [thread:$0]  %s3, 4096, %s58, [#allocation6], 128, 128, 8
    $region17: #{tpu_custom_call.1} parent=1 // pred_fallthru
      _
    // Predicated region
    $region18: #{tpu_custom_call.1} parent=1 // pred_check
      _
    $region19: #{tpu_custom_call.1} parent=1 // pred_check_branch
      %65 = sbr.rel (0) target = $region21
    $region20: #{tpu_custom_call.1} parent=1 // pred_region
      _
    $region21: #{tpu_custom_call.1} parent=1 // pred_fallthru
      _
    // Predicated region
    $region22: #{tpu_custom_call.1} parent=1 // pred_check
      _
    $region23: #{tpu_custom_call.1} parent=1 // pred_check_branch
      %67 = sbr.rel (0) target = $region25
    $region24: #{tpu_custom_call.1} parent=1 // pred_region
      %s69 = ssub.s32 4096, 4096
      %70 = vsyncadd [#allocation9], %s69
      %s71 = sshll.u32 [#allocation8], 4
      %s72 = int_to_ptr.vmem [resolvable:$true] %s71
      %77 = dma.hbm_to_vmem [thread:$0]  %s5, 4096, %s72, [#allocation9], 128, 128, 8
    $region25: #{tpu_custom_call.1} parent=1 // pred_fallthru
      _
    // Predicated region
    $region26: #{tpu_custom_call.1} parent=1 // pred_check
      _
    $region27: #{tpu_custom_call.1} parent=1 // pred_check_branch
      %79 = sbr.rel (0) target = $region29
    $region28: #{tpu_custom_call.1} parent=1 // pred_region
      _
    $region29: #{tpu_custom_call.1} parent=1 // pred_fallthru
      _
    // Predicated region
    $region30: #{tpu_custom_call.1} parent=1 // pred_check
      _
    $region31: #{tpu_custom_call.1} parent=1 // pred_check_branch
      %81 = sbr.rel (0) target = $region33
    $region32: #{tpu_custom_call.1} parent=1 // pred_region
      %s83 = ssub.s32 4096, 4096
      %84 = vsyncadd [#allocation9], %s83
      %s85 = sshll.u32 [#allocation10], 4
      %s86 = int_to_ptr.vmem [resolvable:$true] %s85
      %91 = dma.hbm_to_vmem [thread:$0]  %s7, 4096, %s86, [#allocation9], 128, 128, 8
    $region33: #{tpu_custom_call.1} parent=1 // pred_fallthru
      _
    // Predicated region
    $region34: #{tpu_custom_call.1} parent=1 // pred_check
      _
    $region35: #{tpu_custom_call.1} parent=1 // pred_check_branch
      %93 = sbr.rel (0) target = $region37
    $region36: #{tpu_custom_call.1} parent=1 // pred_region
      _
    $region37: #{tpu_custom_call.1} parent=1 // pred_fallthru
      _
    // Predicated region
    $region38: #{tpu_custom_call.1} parent=1 // pred_check
      _
    $region39: #{tpu_custom_call.1} parent=1 // pred_check_branch
      %95 = sbr.rel (0) target = $region41
    $region40: #{tpu_custom_call.1} parent=1 // pred_region
      %s97 = ssub.s32 4096, 4096
      %98 = vsyncadd [#allocation12], %s97
      %s99 = sshll.u32 [#allocation11], 4
      %s100 = int_to_ptr.vmem [resolvable:$true] %s99
      %105 = dma.hbm_to_vmem [thread:$0]  %s9, 4096, %s100, [#allocation12], 128, 128, 8
    $region41: #{tpu_custom_call.1} parent=1 // pred_fallthru
      _
    // Predicated region
    $region42: #{tpu_custom_call.1} parent=1 // pred_check
      _
    $region43: #{tpu_custom_call.1} parent=1 // pred_check_branch
      %107 = sbr.rel (0) target = $region45
    $region44: #{tpu_custom_call.1} parent=1 // pred_region
      _
    $region45: #{tpu_custom_call.1} parent=1 // pred_fallthru
      _
    // Predicated region
    $region46: #{tpu_custom_call.1} parent=1 // pred_check
      _
    $region47: #{tpu_custom_call.1} parent=1 // pred_check_branch
      %109 = sbr.rel (0) target = $region49
    $region48: #{tpu_custom_call.1} parent=1 // pred_region
      %s111 = ssub.s32 4096, 4096
      %112 = vsyncadd [#allocation12], %s111
      %s113 = sshll.u32 [#allocation13], 4
      %s114 = int_to_ptr.vmem [resolvable:$true] %s113
      %119 = dma.hbm_to_vmem [thread:$0]  %s11, 4096, %s114, [#allocation12], 128, 128, 8
    $region49: #{tpu_custom_call.1} parent=1 // pred_fallthru
      _
    // Predicated region
    $region50: #{tpu_custom_call.1} parent=1 // pred_check
      _
    $region51: #{tpu_custom_call.1} parent=1 // pred_check_branch
      %121 = sbr.rel (0) target = $region53
    $region52: #{tpu_custom_call.1} parent=1 // pred_region
      _
    $region53: #{tpu_custom_call.1} parent=1 // pred_fallthru
      _
    // Predicated region
    $region54: #{tpu_custom_call.1} parent=1 // pred_check
      _
    $region55: #{tpu_custom_call.1} parent=1 // pred_check_branch
      %123 = sbr.rel (0) target = $region57
    $region56: #{tpu_custom_call.1} parent=1 // pred_region
      %s125 = ssub.s32 2048, 2048
      %126 = vsyncadd [#allocation15], %s125
      %s127 = sshll.u32 [#allocation14], 4
      %s128 = int_to_ptr.vmem [resolvable:$true] %s127
      %133 = dma.hbm_to_vmem [thread:$0]  %s13, 2048, %s128, [#allocation15], 64, 64, 4
    $region57: #{tpu_custom_call.1} parent=1 // pred_fallthru
      _
    // Predicated region
    $region58: #{tpu_custom_call.1} parent=1 // pred_check
      _
    $region59: #{tpu_custom_call.1} parent=1 // pred_check_branch
      %135 = sbr.rel (0) target = $region61
    $region60: #{tpu_custom_call.1} parent=1 // pred_region
      _
    $region61: #{tpu_custom_call.1} parent=1 // pred_fallthru
      _
    // Predicated region
    $region62: #{tpu_custom_call.1} parent=1 // pred_check
      _
    $region63: #{tpu_custom_call.1} parent=1 // pred_check_branch
      %137 = sbr.rel (0) target = $region65
    $region64: #{tpu_custom_call.1} parent=1 // pred_region
      %s139 = ssub.s32 1024, 1024
      %140 = vsyncadd [#allocation15], %s139
      %s141 = sshll.u32 [#allocation16], 4
      %s142 = int_to_ptr.vmem [resolvable:$true] %s141
      %147 = dma.hbm_to_vmem [thread:$0]  %s15, 1024, %s142, [#allocation15], 64, 64, 4
    $region65: #{tpu_custom_call.1} parent=1 // pred_fallthru
      _
    // Predicated region
    $region66: #{tpu_custom_call.1} parent=1 // pred_check
      _
    $region67: #{tpu_custom_call.1} parent=1 // pred_check_branch
      %149 = sbr.rel (0) target = $region69
    $region68: #{tpu_custom_call.1} parent=1 // pred_region
      _
    $region69: #{tpu_custom_call.1} parent=1 // pred_fallthru
      _
    // Predicated region
    $region70: #{tpu_custom_call.1} parent=1 // pred_check
      _
    $region71: #{tpu_custom_call.1} parent=1 // pred_check_branch
      %151 = sbr.rel (0) target = $region73
    $region72: #{tpu_custom_call.1} parent=1 // pred_region
      %152 = dma.done [#allocation3], 128
    $region73: #{tpu_custom_call.1} parent=1 // pred_fallthru
      _
    // Predicated region
    $region74: #{tpu_custom_call.1} parent=1 // pred_check
      _
    $region75: #{tpu_custom_call.1} parent=1 // pred_check_branch
      %154 = sbr.rel (0) target = $region77
    $region76: #{tpu_custom_call.1} parent=1 // pred_region
      %155 = dma.done [#allocation6], 512
    $region77: #{tpu_custom_call.1} parent=1 // pred_fallthru
      _
    // Predicated region
    $region78: #{tpu_custom_call.1} parent=1 // pred_check
      _
    $region79: #{tpu_custom_call.1} parent=1 // pred_check_branch
      %157 = sbr.rel (0) target = $region81
    $region80: #{tpu_custom_call.1} parent=1 // pred_region
      %158 = dma.done [#allocation6], 4096
    $region81: #{tpu_custom_call.1} parent=1 // pred_fallthru
      _
    // Predicated region
    $region82: #{tpu_custom_call.1} parent=1 // pred_check
      _
    $region83: #{tpu_custom_call.1} parent=1 // pred_check_branch
      %160 = sbr.rel (0) target = $region85
    $region84: #{tpu_custom_call.1} parent=1 // pred_region
      %161 = dma.done [#allocation9], 4096
    $region85: #{tpu_custom_call.1} parent=1 // pred_fallthru
      _
    // Predicated region
    $region86: #{tpu_custom_call.1} parent=1 // pred_check
      _
    $region87: #{tpu_custom_call.1} parent=1 // pred_check_branch
      %163 = sbr.rel (0) target = $region89
    $region88: #{tpu_custom_call.1} parent=1 // pred_region
      %164 = dma.done [#allocation9], 4096
    $region89: #{tpu_custom_call.1} parent=1 // pred_fallthru
      _
    // Predicated region
    $region90: #{tpu_custom_call.1} parent=1 // pred_check
      _
    $region91: #{tpu_custom_call.1} parent=1 // pred_check_branch
      %166 = sbr.rel (0) target = $region93
    $region92: #{tpu_custom_call.1} parent=1 // pred_region
      %167 = dma.done [#allocation12], 4096
    $region93: #{tpu_custom_call.1} parent=1 // pred_fallthru
      _
    // Predicated region
    $region94: #{tpu_custom_call.1} parent=1 // pred_check
      _
    $region95: #{tpu_custom_call.1} parent=1 // pred_check_branch
      %169 = sbr.rel (0) target = $region97
    $region96: #{tpu_custom_call.1} parent=1 // pred_region
      %170 = dma.done [#allocation12], 4096
    $region97: #{tpu_custom_call.1} parent=1 // pred_fallthru
      _
    // Predicated region
    $region98: #{tpu_custom_call.1} parent=1 // pred_check
      _
    $region99: #{tpu_custom_call.1} parent=1 // pred_check_branch
      %172 = sbr.rel (0) target = $region101
    $region100: #{tpu_custom_call.1} parent=1 // pred_region
      %173 = dma.done [#allocation15], 2048
    $region101: #{tpu_custom_call.1} parent=1 // pred_fallthru
      _
    // Predicated region
    $region102: #{tpu_custom_call.1} parent=1 // pred_check
      _
    $region103: #{tpu_custom_call.1} parent=1 // pred_check_branch
      %175 = sbr.rel (0) target = $region105
    $region104: #{tpu_custom_call.1} parent=1 // pred_region
      %176 = dma.done [#allocation15], 1024
    $region105: #{tpu_custom_call.1} parent=1 // pred_fallthru
      _
    %v178 = vld [vmem:[#allocation2] sm:$0xff]
    %v179 = vld [vmem:[#allocation5] sm:$0xff]
    %v180 = vld [vmem:[#allocation5 + $0x8] sm:$0xff]
    %v181 = vld [vmem:[#allocation5 + $0x10] sm:$0xff]
    %v182 = vld [vmem:[#allocation5 + $0x18] sm:$0xff]
    %v183 = vld [vmem:[%s2] sm:$0x3]
    %v184 = vpack.c.bf16 %v178, %v178
    %v186 = vlaneseq
    %v187 = vshrl.u32 %v186, 7
    %v188 = vsub.s32 0, %v187
    %v189 = vrot.slane %v183, %v188
    %v190 = vlaneseq
    %v191 = vshrl.u32 %v190, 7
    %v192 = vsub.s32 1, %v191
    %v193 = vrot.slane %v183, %v192
    %v200 = vunpack.c.l.b16 %v179
    %v201 = vunpack.c.h.b16 %v179
    %v202 = vunpack.c.l.b16 %v180
    %v203 = vunpack.c.h.b16 %v180
    %v204 = vunpack.c.l.b16 %v181
    %v205 = vunpack.c.h.b16 %v181
    %v206 = vunpack.c.l.b16 %v182
    %v207 = vunpack.c.h.b16 %v182
    %v208 = vpack.c.b16 %v202, %v200
    %v209 = vpack.c.b16 %v203, %v201
    %v210 = vpack.c.b16 %v206, %v204
    %v211 = vpack.c.b16 %v207, %v205
    %vm216 = vcmask 261120
    %v218 = vsel %vm216, %v184, 0
    %220 = vmatprep.subr.bf16.mxu0 %v209
    %221 = vmatpush1.bf16.msra.mxu0 %v208
    %222 = vmatprep.subr.bf16.mxu0 %v211
    %223 = vmatpush1.bf16.msra.mxu0 %v210
    %224 = vmatprep.subr.bf16.mxu0 0
    %225 = vmatpush1.bf16.msra.mxu0 0
    %226 = vmatprep.subr.bf16.mxu0 0
    %227 = vmatpush1.bf16.msra.mxu0 0
    %228 = vmatprep.subr.bf16.mxu0 0
    %229 = vmatpush1.bf16.msra.mxu0 0
    %230 = vmatprep.subr.bf16.mxu0 0
    %231 = vmatpush1.bf16.msra.mxu0 0
    %232 = vmatprep.subr.bf16.mxu0 0
    %233 = vmatpush1.bf16.msra.mxu0 0
    %234 = vmatprep.subr.bf16.mxu0 0
    %235 = vmatpush1.bf16.msra.mxu0 0
    %236 = vmatprep.subr.bf16.mxu0 0
    %237 = vmatpush1.bf16.msra.mxu0 0
    %238 = vmatprep.subr.bf16.mxu0 0
    %239 = vmatpush1.bf16.msra.mxu0 0
    %240 = vmatprep.subr.bf16.mxu0 0
    %241 = vmatpush1.bf16.msra.mxu0 0
    %242 = vmatprep.subr.bf16.mxu0 0
    %243 = vmatpush1.bf16.msra.mxu0 0
    %244 = vmatprep.subr.bf16.mxu0 0
    %245 = vmatpush1.bf16.msra.mxu0 0
    %246 = vmatprep.subr.bf16.mxu0 0
    %247 = vmatpush1.bf16.msra.mxu0 0
    %248 = vmatprep.subr.bf16.mxu0 0
    %249 = vmatpush1.bf16.msra.mxu0 0
    %250 = vmatprep.subr.bf16.mxu0 0
    %251 = vmatpush1.bf16.msra.mxu0 0
    %252 = vmatprep.mubr.bf16.mxu0 0
    %253 = vmatmul.mubr.bf16.gmra.mrb[0].mxu0 %v218
    %v254 = vpop.f32.mrb[0].mxu0
    %v255 = vadd.f32 %v189, %v254
    %v256 = vpop.f32.mrb[0].mxu0
    %v257 = vadd.f32 %v193, %v256
    %v258 = vpop.f32.mrb[0].mxu0
    %v259 = vpop.f32.mrb[0].mxu0
    %260 = vdwg.mxu0
    %v261 = vld [vmem:[#allocation7] sm:$0xff]
    %v262 = vld [vmem:[#allocation7 + $0x8] sm:$0xff]
    %v263 = vld [vmem:[#allocation7 + $0x10] sm:$0xff]
    %v264 = vld [vmem:[#allocation7 + $0x18] sm:$0xff]
    %v265 = vld [vmem:[#allocation7 + $0x20] sm:$0xff]
    %v266 = vld [vmem:[#allocation7 + $0x28] sm:$0xff]
    %v267 = vld [vmem:[#allocation7 + $0x30] sm:$0xff]
    %v268 = vld [vmem:[#allocation7 + $0x38] sm:$0xff]
    %v269 = vld [vmem:[#allocation7 + $0x40] sm:$0xff]
    %v270 = vld [vmem:[#allocation7 + $0x48] sm:$0xff]
    %v271 = vld [vmem:[#allocation7 + $0x50] sm:$0xff]
    %v272 = vld [vmem:[#allocation7 + $0x58] sm:$0xff]
    %v273 = vld [vmem:[#allocation7 + $0x60] sm:$0xff]
    %v274 = vld [vmem:[#allocation7 + $0x68] sm:$0xff]
    %v275 = vld [vmem:[#allocation7 + $0x70] sm:$0xff]
    %v276 = vld [vmem:[#allocation7 + $0x78] sm:$0xff]
    %v277 = vld [vmem:[#allocation7 + $0x80] sm:$0xff]
    %v278 = vld [vmem:[#allocation7 + $0x88] sm:$0xff]
    %v279 = vld [vmem:[#allocation7 + $0x90] sm:$0xff]
    %v280 = vld [vmem:[#allocation7 + $0x98] sm:$0xff]
    %v281 = vld [vmem:[#allocation7 + $0xa0] sm:$0xff]
    %v282 = vld [vmem:[#allocation7 + $0xa8] sm:$0xff]
    %v283 = vld [vmem:[#allocation7 + $0xb0] sm:$0xff]
    %v284 = vld [vmem:[#allocation7 + $0xb8] sm:$0xff]
    %v285 = vld [vmem:[#allocation7 + $0xc0] sm:$0xff]
    %v286 = vld [vmem:[#allocation7 + $0xc8] sm:$0xff]
    %v287 = vld [vmem:[#allocation7 + $0xd0] sm:$0xff]
    %v288 = vld [vmem:[#allocation7 + $0xd8] sm:$0xff]
    %v289 = vld [vmem:[#allocation7 + $0xe0] sm:$0xff]
    %v290 = vld [vmem:[#allocation7 + $0xe8] sm:$0xff]
    %v291 = vld [vmem:[#allocation7 + $0xf0] sm:$0xff]
    %v292 = vld [vmem:[#allocation7 + $0xf8] sm:$0xff]
    %v293 = vld [vmem:[%s4] sm:$0x3]
    %v294 = vpack.c.bf16 %v255, %v255
    %v295 = vpack.c.bf16 %v257, %v257
    %v297 = vlaneseq
    %v298 = vshrl.u32 %v297, 7
    %v299 = vsub.s32 0, %v298
    %v300 = vrot.slane %v293, %v299
    %v301 = vlaneseq
    %v302 = vshrl.u32 %v301, 7
    %v303 = vsub.s32 1, %v302
    %v304 = vrot.slane %v293, %v303
    %v339 = vunpack.c.l.b16 %v261
    %v340 = vunpack.c.h.b16 %v261
    %v341 = vunpack.c.l.b16 %v262
    %v342 = vunpack.c.h.b16 %v262
    %v343 = vunpack.c.l.b16 %v263
    %v344 = vunpack.c.h.b16 %v263
    %v345 = vunpack.c.l.b16 %v264
    %v346 = vunpack.c.h.b16 %v264
    %v347 = vunpack.c.l.b16 %v265
    %v348 = vunpack.c.h.b16 %v265
    %v349 = vunpack.c.l.b16 %v266
    %v350 = vunpack.c.h.b16 %v266
    %v351 = vunpack.c.l.b16 %v267
    %v352 = vunpack.c.h.b16 %v267
    %v353 = vunpack.c.l.b16 %v268
    %v354 = vunpack.c.h.b16 %v268
    %v355 = vunpack.c.l.b16 %v269
    %v356 = vunpack.c.h.b16 %v269
    %v357 = vunpack.c.l.b16 %v270
    %v358 = vunpack.c.h.b16 %v270
    %v359 = vunpack.c.l.b16 %v271
    %v360 = vunpack.c.h.b16 %v271
    %v361 = vunpack.c.l.b16 %v272
    %v362 = vunpack.c.h.b16 %v272
    %v363 = vunpack.c.l.b16 %v273
    %v364 = vunpack.c.h.b16 %v273
    %v365 = vunpack.c.l.b16 %v274
    %v366 = vunpack.c.h.b16 %v274
    %v367 = vunpack.c.l.b16 %v275
    %v368 = vunpack.c.h.b16 %v275
    %v369 = vunpack.c.l.b16 %v276
    %v370 = vunpack.c.h.b16 %v276
    %v371 = vunpack.c.l.b16 %v277
    %v372 = vunpack.c.h.b16 %v277
    %v373 = vunpack.c.l.b16 %v278
    %v374 = vunpack.c.h.b16 %v278
    %v375 = vunpack.c.l.b16 %v279
    %v376 = vunpack.c.h.b16 %v279
    %v377 = vunpack.c.l.b16 %v280
    %v378 = vunpack.c.h.b16 %v280
    %v379 = vunpack.c.l.b16 %v281
    %v380 = vunpack.c.h.b16 %v281
    %v381 = vunpack.c.l.b16 %v282
    %v382 = vunpack.c.h.b16 %v282
    %v383 = vunpack.c.l.b16 %v283
    %v384 = vunpack.c.h.b16 %v283
    %v385 = vunpack.c.l.b16 %v284
    %v386 = vunpack.c.h.b16 %v284
    %v387 = vunpack.c.l.b16 %v285
    %v388 = vunpack.c.h.b16 %v285
    %v389 = vunpack.c.l.b16 %v286
    %v390 = vunpack.c.h.b16 %v286
    %v391 = vunpack.c.l.b16 %v287
    %v392 = vunpack.c.h.b16 %v287
    %v393 = vunpack.c.l.b16 %v288
    %v394 = vunpack.c.h.b16 %v288
    %v395 = vunpack.c.l.b16 %v289
    %v396 = vunpack.c.h.b16 %v289
    %v397 = vunpack.c.l.b16 %v290
    %v398 = vunpack.c.h.b16 %v290
    %v399 = vunpack.c.l.b16 %v291
    %v400 = vunpack.c.h.b16 %v291
    %v401 = vunpack.c.l.b16 %v292
    %v402 = vunpack.c.h.b16 %v292
    %v403 = vpack.c.b16 %v341, %v339
    %v404 = vpack.c.b16 %v342, %v340
    %v405 = vpack.c.b16 %v345, %v343
    %v406 = vpack.c.b16 %v346, %v344
    %v407 = vpack.c.b16 %v349, %v347
    %v408 = vpack.c.b16 %v350, %v348
    %v409 = vpack.c.b16 %v353, %v351
    %v410 = vpack.c.b16 %v354, %v352
    %v411 = vpack.c.b16 %v357, %v355
    %v412 = vpack.c.b16 %v358, %v356
    %v413 = vpack.c.b16 %v361, %v359
    %v414 = vpack.c.b16 %v362, %v360
    %v415 = vpack.c.b16 %v365, %v363
    %v416 = vpack.c.b16 %v366, %v364
    %v417 = vpack.c.b16 %v369, %v367
    %v418 = vpack.c.b16 %v370, %v368
    %v419 = vpack.c.b16 %v373, %v371
    %v420 = vpack.c.b16 %v374, %v372
    %v421 = vpack.c.b16 %v377, %v375
    %v422 = vpack.c.b16 %v378, %v376
    %v423 = vpack.c.b16 %v381, %v379
    %v424 = vpack.c.b16 %v382, %v380
    %v425 = vpack.c.b16 %v385, %v383
    %v426 = vpack.c.b16 %v386, %v384
    %v427 = vpack.c.b16 %v389, %v387
    %v428 = vpack.c.b16 %v390, %v388
    %v429 = vpack.c.b16 %v393, %v391
    %v430 = vpack.c.b16 %v394, %v392
    %v431 = vpack.c.b16 %v397, %v395
    %v432 = vpack.c.b16 %v398, %v396
    %v433 = vpack.c.b16 %v401, %v399
    %v434 = vpack.c.b16 %v402, %v400
    %467 = vmatprep.subr.bf16.mxu0 %v404
    %468 = vmatpush1.bf16.msra.mxu0 %v403
    %469 = vmatprep.subr.bf16.mxu0 %v406
    %470 = vmatpush1.bf16.msra.mxu0 %v405
    %471 = vmatprep.subr.bf16.mxu0 %v408
    %472 = vmatpush1.bf16.msra.mxu0 %v407
    %473 = vmatprep.subr.bf16.mxu0 %v410
    %474 = vmatpush1.bf16.msra.mxu0 %v409
    %475 = vmatprep.subr.bf16.mxu0 %v412
    %476 = vmatpush1.bf16.msra.mxu0 %v411
    %477 = vmatprep.subr.bf16.mxu0 %v414
    %478 = vmatpush1.bf16.msra.mxu0 %v413
    %479 = vmatprep.subr.bf16.mxu0 %v416
    %480 = vmatpush1.bf16.msra.mxu0 %v415
    %481 = vmatprep.subr.bf16.mxu0 %v418
    %482 = vmatpush1.bf16.msra.mxu0 %v417
    %483 = vmatprep.subr.bf16.mxu0 %v420
    %484 = vmatpush1.bf16.msra.mxu0 %v419
    %485 = vmatprep.subr.bf16.mxu0 %v422
    %486 = vmatpush1.bf16.msra.mxu0 %v421
    %487 = vmatprep.subr.bf16.mxu0 %v424
    %488 = vmatpush1.bf16.msra.mxu0 %v423
    %489 = vmatprep.subr.bf16.mxu0 %v426
    %490 = vmatpush1.bf16.msra.mxu0 %v425
    %491 = vmatprep.subr.bf16.mxu0 %v428
    %492 = vmatpush1.bf16.msra.mxu0 %v427
    %493 = vmatprep.subr.bf16.mxu0 %v430
    %494 = vmatpush1.bf16.msra.mxu0 %v429
    %495 = vmatprep.subr.bf16.mxu0 %v432
    %496 = vmatpush1.bf16.msra.mxu0 %v431
    %497 = vmatprep.subr.bf16.mxu0 %v434
    %498 = vmatpush1.bf16.msra.mxu0 %v433
    %499 = vmatprep.mubr.bf16.mxu0 %v295
    %500 = vmatmul.mubr.bf16.gmra.mrb[0].mxu0 %v294
    %v501 = vpop.f32.mrb[0].mxu0
    %v502 = vadd.f32 %v300, %v501
    %v503 = vpop.f32.mrb[0].mxu0
    %v504 = vadd.f32 %v304, %v503
    %v505 = vpop.f32.mrb[0].mxu0
    %v506 = vpop.f32.mrb[0].mxu0
    %507 = vdwg.mxu0
    %v508 = vmax.f32 %v502, 0.0
    %v509 = vmax.f32 %v504, 0.0
    %v510 = vld [vmem:[#allocation8] sm:$0xff]
    %v511 = vld [vmem:[#allocation8 + $0x8] sm:$0xff]
    %v512 = vld [vmem:[#allocation8 + $0x10] sm:$0xff]
    %v513 = vld [vmem:[#allocation8 + $0x18] sm:$0xff]
    %v514 = vld [vmem:[#allocation8 + $0x20] sm:$0xff]
    %v515 = vld [vmem:[#allocation8 + $0x28] sm:$0xff]
    %v516 = vld [vmem:[#allocation8 + $0x30] sm:$0xff]
    %v517 = vld [vmem:[#allocation8 + $0x38] sm:$0xff]
    %v518 = vld [vmem:[#allocation8 + $0x40] sm:$0xff]
    %v519 = vld [vmem:[#allocation8 + $0x48] sm:$0xff]
    %v520 = vld [vmem:[#allocation8 + $0x50] sm:$0xff]
    %v521 = vld [vmem:[#allocation8 + $0x58] sm:$0xff]
    %v522 = vld [vmem:[#allocation8 + $0x60] sm:$0xff]
    %v523 = vld [vmem:[#allocation8 + $0x68] sm:$0xff]
    %v524 = vld [vmem:[#allocation8 + $0x70] sm:$0xff]
    %v525 = vld [vmem:[#allocation8 + $0x78] sm:$0xff]
    %v526 = vld [vmem:[#allocation8 + $0x80] sm:$0xff]
    %v527 = vld [vmem:[#allocation8 + $0x88] sm:$0xff]
    %v528 = vld [vmem:[#allocation8 + $0x90] sm:$0xff]
    %v529 = vld [vmem:[#allocation8 + $0x98] sm:$0xff]
    %v530 = vld [vmem:[#allocation8 + $0xa0] sm:$0xff]
    %v531 = vld [vmem:[#allocation8 + $0xa8] sm:$0xff]
    %v532 = vld [vmem:[#allocation8 + $0xb0] sm:$0xff]
    %v533 = vld [vmem:[#allocation8 + $0xb8] sm:$0xff]
    %v534 = vld [vmem:[#allocation8 + $0xc0] sm:$0xff]
    %v535 = vld [vmem:[#allocation8 + $0xc8] sm:$0xff]
    %v536 = vld [vmem:[#allocation8 + $0xd0] sm:$0xff]
    %v537 = vld [vmem:[#allocation8 + $0xd8] sm:$0xff]
    %v538 = vld [vmem:[#allocation8 + $0xe0] sm:$0xff]
    %v539 = vld [vmem:[#allocation8 + $0xe8] sm:$0xff]
    %v540 = vld [vmem:[#allocation8 + $0xf0] sm:$0xff]
    %v541 = vld [vmem:[#allocation8 + $0xf8] sm:$0xff]
    %v542 = vld [vmem:[%s6] sm:$0x3]
    %v543 = vpack.c.bf16 %v508, %v508
    %v544 = vpack.c.bf16 %v509, %v509
    %v546 = vlaneseq
    %v547 = vshrl.u32 %v546, 7
    %v548 = vsub.s32 0, %v547
    %v549 = vrot.slane %v542, %v548
    %v550 = vlaneseq
    %v551 = vshrl.u32 %v550, 7
    %v552 = vsub.s32 1, %v551
    %v553 = vrot.slane %v542, %v552
    %v588 = vunpack.c.l.b16 %v510
    %v589 = vunpack.c.h.b16 %v510
    %v590 = vunpack.c.l.b16 %v511
    %v591 = vunpack.c.h.b16 %v511
    %v592 = vunpack.c.l.b16 %v512
    %v593 = vunpack.c.h.b16 %v512
    %v594 = vunpack.c.l.b16 %v513
    %v595 = vunpack.c.h.b16 %v513
    %v596 = vunpack.c.l.b16 %v514
    %v597 = vunpack.c.h.b16 %v514
    %v598 = vunpack.c.l.b16 %v515
    %v599 = vunpack.c.h.b16 %v515
    %v600 = vunpack.c.l.b16 %v516
    %v601 = vunpack.c.h.b16 %v516
    %v602 = vunpack.c.l.b16 %v517
    %v603 = vunpack.c.h.b16 %v517
    %v604 = vunpack.c.l.b16 %v518
    %v605 = vunpack.c.h.b16 %v518
    %v606 = vunpack.c.l.b16 %v519
    %v607 = vunpack.c.h.b16 %v519
    %v608 = vunpack.c.l.b16 %v520
    %v609 = vunpack.c.h.b16 %v520
    %v610 = vunpack.c.l.b16 %v521
    %v611 = vunpack.c.h.b16 %v521
    %v612 = vunpack.c.l.b16 %v522
    %v613 = vunpack.c.h.b16 %v522
    %v614 = vunpack.c.l.b16 %v523
    %v615 = vunpack.c.h.b16 %v523
    %v616 = vunpack.c.l.b16 %v524
    %v617 = vunpack.c.h.b16 %v524
    %v618 = vunpack.c.l.b16 %v525
    %v619 = vunpack.c.h.b16 %v525
    %v620 = vunpack.c.l.b16 %v526
    %v621 = vunpack.c.h.b16 %v526
    %v622 = vunpack.c.l.b16 %v527
    %v623 = vunpack.c.h.b16 %v527
    %v624 = vunpack.c.l.b16 %v528
    %v625 = vunpack.c.h.b16 %v528
    %v626 = vunpack.c.l.b16 %v529
    %v627 = vunpack.c.h.b16 %v529
    %v628 = vunpack.c.l.b16 %v530
    %v629 = vunpack.c.h.b16 %v530
    %v630 = vunpack.c.l.b16 %v531
    %v631 = vunpack.c.h.b16 %v531
    %v632 = vunpack.c.l.b16 %v532
    %v633 = vunpack.c.h.b16 %v532
    %v634 = vunpack.c.l.b16 %v533
    %v635 = vunpack.c.h.b16 %v533
    %v636 = vunpack.c.l.b16 %v534
    %v637 = vunpack.c.h.b16 %v534
    %v638 = vunpack.c.l.b16 %v535
    %v639 = vunpack.c.h.b16 %v535
    %v640 = vunpack.c.l.b16 %v536
    %v641 = vunpack.c.h.b16 %v536
    %v642 = vunpack.c.l.b16 %v537
    %v643 = vunpack.c.h.b16 %v537
    %v644 = vunpack.c.l.b16 %v538
    %v645 = vunpack.c.h.b16 %v538
    %v646 = vunpack.c.l.b16 %v539
    %v647 = vunpack.c.h.b16 %v539
    %v648 = vunpack.c.l.b16 %v540
    %v649 = vunpack.c.h.b16 %v540
    %v650 = vunpack.c.l.b16 %v541
    %v651 = vunpack.c.h.b16 %v541
    %v652 = vpack.c.b16 %v590, %v588
    %v653 = vpack.c.b16 %v591, %v589
    %v654 = vpack.c.b16 %v594, %v592
    %v655 = vpack.c.b16 %v595, %v593
    %v656 = vpack.c.b16 %v598, %v596
    %v657 = vpack.c.b16 %v599, %v597
    %v658 = vpack.c.b16 %v602, %v600
    %v659 = vpack.c.b16 %v603, %v601
    %v660 = vpack.c.b16 %v606, %v604
    %v661 = vpack.c.b16 %v607, %v605
    %v662 = vpack.c.b16 %v610, %v608
    %v663 = vpack.c.b16 %v611, %v609
    %v664 = vpack.c.b16 %v614, %v612
    %v665 = vpack.c.b16 %v615, %v613
    %v666 = vpack.c.b16 %v618, %v616
    %v667 = vpack.c.b16 %v619, %v617
    %v668 = vpack.c.b16 %v622, %v620
    %v669 = vpack.c.b16 %v623, %v621
    %v670 = vpack.c.b16 %v626, %v624
    %v671 = vpack.c.b16 %v627, %v625
    %v672 = vpack.c.b16 %v630, %v628
    %v673 = vpack.c.b16 %v631, %v629
    %v674 = vpack.c.b16 %v634, %v632
    %v675 = vpack.c.b16 %v635, %v633
    %v676 = vpack.c.b16 %v638, %v636
    %v677 = vpack.c.b16 %v639, %v637
    %v678 = vpack.c.b16 %v642, %v640
    %v679 = vpack.c.b16 %v643, %v641
    %v680 = vpack.c.b16 %v646, %v644
    %v681 = vpack.c.b16 %v647, %v645
    %v682 = vpack.c.b16 %v650, %v648
    %v683 = vpack.c.b16 %v651, %v649
    %716 = vmatprep.subr.bf16.mxu0 %v653
    %717 = vmatpush1.bf16.msra.mxu0 %v652
    %718 = vmatprep.subr.bf16.mxu0 %v655
    %719 = vmatpush1.bf16.msra.mxu0 %v654
    %720 = vmatprep.subr.bf16.mxu0 %v657
    %721 = vmatpush1.bf16.msra.mxu0 %v656
    %722 = vmatprep.subr.bf16.mxu0 %v659
    %723 = vmatpush1.bf16.msra.mxu0 %v658
    %724 = vmatprep.subr.bf16.mxu0 %v661
    %725 = vmatpush1.bf16.msra.mxu0 %v660
    %726 = vmatprep.subr.bf16.mxu0 %v663
    %727 = vmatpush1.bf16.msra.mxu0 %v662
    %728 = vmatprep.subr.bf16.mxu0 %v665
    %729 = vmatpush1.bf16.msra.mxu0 %v664
    %730 = vmatprep.subr.bf16.mxu0 %v667
    %731 = vmatpush1.bf16.msra.mxu0 %v666
    %732 = vmatprep.subr.bf16.mxu0 %v669
    %733 = vmatpush1.bf16.msra.mxu0 %v668
    %734 = vmatprep.subr.bf16.mxu0 %v671
    %735 = vmatpush1.bf16.msra.mxu0 %v670
    %736 = vmatprep.subr.bf16.mxu0 %v673
    %737 = vmatpush1.bf16.msra.mxu0 %v672
    %738 = vmatprep.subr.bf16.mxu0 %v675
    %739 = vmatpush1.bf16.msra.mxu0 %v674
    %740 = vmatprep.subr.bf16.mxu0 %v677
    %741 = vmatpush1.bf16.msra.mxu0 %v676
    %742 = vmatprep.subr.bf16.mxu0 %v679
    %743 = vmatpush1.bf16.msra.mxu0 %v678
    %744 = vmatprep.subr.bf16.mxu0 %v681
    %745 = vmatpush1.bf16.msra.mxu0 %v680
    %746 = vmatprep.subr.bf16.mxu0 %v683
    %747 = vmatpush1.bf16.msra.mxu0 %v682
    %748 = vmatprep.mubr.bf16.mxu0 %v544
    %749 = vmatmul.mubr.bf16.gmra.mrb[0].mxu0 %v543
    %v750 = vpop.f32.mrb[0].mxu0
    %v751 = vadd.f32 %v549, %v750
    %v752 = vpop.f32.mrb[0].mxu0
    %v753 = vadd.f32 %v553, %v752
    %v754 = vpop.f32.mrb[0].mxu0
    %v755 = vpop.f32.mrb[0].mxu0
    %756 = vdwg.mxu0
    %v757 = vmax.f32 %v751, 0.0
    %v758 = vmax.f32 %v753, 0.0
    %v759 = vadd.f32 %v255, %v757
    %v760 = vadd.f32 %v257, %v758
    %v761 = vld [vmem:[#allocation10] sm:$0xff]
    %v762 = vld [vmem:[#allocation10 + $0x8] sm:$0xff]
    %v763 = vld [vmem:[#allocation10 + $0x10] sm:$0xff]
    %v764 = vld [vmem:[#allocation10 + $0x18] sm:$0xff]
    %v765 = vld [vmem:[#allocation10 + $0x20] sm:$0xff]
    %v766 = vld [vmem:[#allocation10 + $0x28] sm:$0xff]
    %v767 = vld [vmem:[#allocation10 + $0x30] sm:$0xff]
    %v768 = vld [vmem:[#allocation10 + $0x38] sm:$0xff]
    %v769 = vld [vmem:[#allocation10 + $0x40] sm:$0xff]
    %v770 = vld [vmem:[#allocation10 + $0x48] sm:$0xff]
    %v771 = vld [vmem:[#allocation10 + $0x50] sm:$0xff]
    %v772 = vld [vmem:[#allocation10 + $0x58] sm:$0xff]
    %v773 = vld [vmem:[#allocation10 + $0x60] sm:$0xff]
    %v774 = vld [vmem:[#allocation10 + $0x68] sm:$0xff]
    %v775 = vld [vmem:[#allocation10 + $0x70] sm:$0xff]
    %v776 = vld [vmem:[#allocation10 + $0x78] sm:$0xff]
    %v777 = vld [vmem:[#allocation10 + $0x80] sm:$0xff]
    %v778 = vld [vmem:[#allocation10 + $0x88] sm:$0xff]
    %v779 = vld [vmem:[#allocation10 + $0x90] sm:$0xff]
    %v780 = vld [vmem:[#allocation10 + $0x98] sm:$0xff]
    %v781 = vld [vmem:[#allocation10 + $0xa0] sm:$0xff]
    %v782 = vld [vmem:[#allocation10 + $0xa8] sm:$0xff]
    %v783 = vld [vmem:[#allocation10 + $0xb0] sm:$0xff]
    %v784 = vld [vmem:[#allocation10 + $0xb8] sm:$0xff]
    %v785 = vld [vmem:[#allocation10 + $0xc0] sm:$0xff]
    %v786 = vld [vmem:[#allocation10 + $0xc8] sm:$0xff]
    %v787 = vld [vmem:[#allocation10 + $0xd0] sm:$0xff]
    %v788 = vld [vmem:[#allocation10 + $0xd8] sm:$0xff]
    %v789 = vld [vmem:[#allocation10 + $0xe0] sm:$0xff]
    %v790 = vld [vmem:[#allocation10 + $0xe8] sm:$0xff]
    %v791 = vld [vmem:[#allocation10 + $0xf0] sm:$0xff]
    %v792 = vld [vmem:[#allocation10 + $0xf8] sm:$0xff]
    %v793 = vld [vmem:[%s8] sm:$0x3]
    %v794 = vpack.c.bf16 %v759, %v759
    %v795 = vpack.c.bf16 %v760, %v760
    %v797 = vlaneseq
    %v798 = vshrl.u32 %v797, 7
    %v799 = vsub.s32 0, %v798
    %v800 = vrot.slane %v793, %v799
    %v801 = vlaneseq
    %v802 = vshrl.u32 %v801, 7
    %v803 = vsub.s32 1, %v802
    %v804 = vrot.slane %v793, %v803
    %v839 = vunpack.c.l.b16 %v761
    %v840 = vunpack.c.h.b16 %v761
    %v841 = vunpack.c.l.b16 %v762
    %v842 = vunpack.c.h.b16 %v762
    %v843 = vunpack.c.l.b16 %v763
    %v844 = vunpack.c.h.b16 %v763
    %v845 = vunpack.c.l.b16 %v764
    %v846 = vunpack.c.h.b16 %v764
    %v847 = vunpack.c.l.b16 %v765
    %v848 = vunpack.c.h.b16 %v765
    %v849 = vunpack.c.l.b16 %v766
    %v850 = vunpack.c.h.b16 %v766
    %v851 = vunpack.c.l.b16 %v767
    %v852 = vunpack.c.h.b16 %v767
    %v853 = vunpack.c.l.b16 %v768
    %v854 = vunpack.c.h.b16 %v768
    %v855 = vunpack.c.l.b16 %v769
    %v856 = vunpack.c.h.b16 %v769
    %v857 = vunpack.c.l.b16 %v770
    %v858 = vunpack.c.h.b16 %v770
    %v859 = vunpack.c.l.b16 %v771
    %v860 = vunpack.c.h.b16 %v771
    %v861 = vunpack.c.l.b16 %v772
    %v862 = vunpack.c.h.b16 %v772
    %v863 = vunpack.c.l.b16 %v773
    %v864 = vunpack.c.h.b16 %v773
    %v865 = vunpack.c.l.b16 %v774
    %v866 = vunpack.c.h.b16 %v774
    %v867 = vunpack.c.l.b16 %v775
    %v868 = vunpack.c.h.b16 %v775
    %v869 = vunpack.c.l.b16 %v776
    %v870 = vunpack.c.h.b16 %v776
    %v871 = vunpack.c.l.b16 %v777
    %v872 = vunpack.c.h.b16 %v777
    %v873 = vunpack.c.l.b16 %v778
    %v874 = vunpack.c.h.b16 %v778
    %v875 = vunpack.c.l.b16 %v779
    %v876 = vunpack.c.h.b16 %v779
    %v877 = vunpack.c.l.b16 %v780
    %v878 = vunpack.c.h.b16 %v780
    %v879 = vunpack.c.l.b16 %v781
    %v880 = vunpack.c.h.b16 %v781
    %v881 = vunpack.c.l.b16 %v782
    %v882 = vunpack.c.h.b16 %v782
    %v883 = vunpack.c.l.b16 %v783
    %v884 = vunpack.c.h.b16 %v783
    %v885 = vunpack.c.l.b16 %v784
    %v886 = vunpack.c.h.b16 %v784
    %v887 = vunpack.c.l.b16 %v785
    %v888 = vunpack.c.h.b16 %v785
    %v889 = vunpack.c.l.b16 %v786
    %v890 = vunpack.c.h.b16 %v786
    %v891 = vunpack.c.l.b16 %v787
    %v892 = vunpack.c.h.b16 %v787
    %v893 = vunpack.c.l.b16 %v788
    %v894 = vunpack.c.h.b16 %v788
    %v895 = vunpack.c.l.b16 %v789
    %v896 = vunpack.c.h.b16 %v789
    %v897 = vunpack.c.l.b16 %v790
    %v898 = vunpack.c.h.b16 %v790
    %v899 = vunpack.c.l.b16 %v791
    %v900 = vunpack.c.h.b16 %v791
    %v901 = vunpack.c.l.b16 %v792
    %v902 = vunpack.c.h.b16 %v792
    %v903 = vpack.c.b16 %v841, %v839
    %v904 = vpack.c.b16 %v842, %v840
    %v905 = vpack.c.b16 %v845, %v843
    %v906 = vpack.c.b16 %v846, %v844
    %v907 = vpack.c.b16 %v849, %v847
    %v908 = vpack.c.b16 %v850, %v848
    %v909 = vpack.c.b16 %v853, %v851
    %v910 = vpack.c.b16 %v854, %v852
    %v911 = vpack.c.b16 %v857, %v855
    %v912 = vpack.c.b16 %v858, %v856
    %v913 = vpack.c.b16 %v861, %v859
    %v914 = vpack.c.b16 %v862, %v860
    %v915 = vpack.c.b16 %v865, %v863
    %v916 = vpack.c.b16 %v866, %v864
    %v917 = vpack.c.b16 %v869, %v867
    %v918 = vpack.c.b16 %v870, %v868
    %v919 = vpack.c.b16 %v873, %v871
    %v920 = vpack.c.b16 %v874, %v872
    %v921 = vpack.c.b16 %v877, %v875
    %v922 = vpack.c.b16 %v878, %v876
    %v923 = vpack.c.b16 %v881, %v879
    %v924 = vpack.c.b16 %v882, %v880
    %v925 = vpack.c.b16 %v885, %v883
    %v926 = vpack.c.b16 %v886, %v884
    %v927 = vpack.c.b16 %v889, %v887
    %v928 = vpack.c.b16 %v890, %v888
    %v929 = vpack.c.b16 %v893, %v891
    %v930 = vpack.c.b16 %v894, %v892
    %v931 = vpack.c.b16 %v897, %v895
    %v932 = vpack.c.b16 %v898, %v896
    %v933 = vpack.c.b16 %v901, %v899
    %v934 = vpack.c.b16 %v902, %v900
    %967 = vmatprep.subr.bf16.mxu0 %v904
    %968 = vmatpush1.bf16.msra.mxu0 %v903
    %969 = vmatprep.subr.bf16.mxu0 %v906
    %970 = vmatpush1.bf16.msra.mxu0 %v905
    %971 = vmatprep.subr.bf16.mxu0 %v908
    %972 = vmatpush1.bf16.msra.mxu0 %v907
    %973 = vmatprep.subr.bf16.mxu0 %v910
    %974 = vmatpush1.bf16.msra.mxu0 %v909
    %975 = vmatprep.subr.bf16.mxu0 %v912
    %976 = vmatpush1.bf16.msra.mxu0 %v911
    %977 = vmatprep.subr.bf16.mxu0 %v914
    %978 = vmatpush1.bf16.msra.mxu0 %v913
    %979 = vmatprep.subr.bf16.mxu0 %v916
    %980 = vmatpush1.bf16.msra.mxu0 %v915
    %981 = vmatprep.subr.bf16.mxu0 %v918
    %982 = vmatpush1.bf16.msra.mxu0 %v917
    %983 = vmatprep.subr.bf16.mxu0 %v920
    %984 = vmatpush1.bf16.msra.mxu0 %v919
    %985 = vmatprep.subr.bf16.mxu0 %v922
    %986 = vmatpush1.bf16.msra.mxu0 %v921
    %987 = vmatprep.subr.bf16.mxu0 %v924
    %988 = vmatpush1.bf16.msra.mxu0 %v923
    %989 = vmatprep.subr.bf16.mxu0 %v926
    %990 = vmatpush1.bf16.msra.mxu0 %v925
    %991 = vmatprep.subr.bf16.mxu0 %v928
    %992 = vmatpush1.bf16.msra.mxu0 %v927
    %993 = vmatprep.subr.bf16.mxu0 %v930
    %994 = vmatpush1.bf16.msra.mxu0 %v929
    %995 = vmatprep.subr.bf16.mxu0 %v932
    %996 = vmatpush1.bf16.msra.mxu0 %v931
    %997 = vmatprep.subr.bf16.mxu0 %v934
    %998 = vmatpush1.bf16.msra.mxu0 %v933
    %999 = vmatprep.mubr.bf16.mxu0 %v795
    %1000 = vmatmul.mubr.bf16.gmra.mrb[0].mxu0 %v794
    %v1001 = vpop.f32.mrb[0].mxu0
    %v1002 = vadd.f32 %v800, %v1001
    %v1003 = vpop.f32.mrb[0].mxu0
    %v1004 = vadd.f32 %v804, %v1003
    %v1005 = vpop.f32.mrb[0].mxu0
    %v1006 = vpop.f32.mrb[0].mxu0
    %1007 = vdwg.mxu0
    %v1008 = vld [vmem:[#allocation11] sm:$0xff]
    %v1009 = vld [vmem:[#allocation11 + $0x8] sm:$0xff]
    %v1010 = vld [vmem:[#allocation11 + $0x10] sm:$0xff]
    %v1011 = vld [vmem:[#allocation11 + $0x18] sm:$0xff]
    %v1012 = vld [vmem:[#allocation11 + $0x20] sm:$0xff]
    %v1013 = vld [vmem:[#allocation11 + $0x28] sm:$0xff]
    %v1014 = vld [vmem:[#allocation11 + $0x30] sm:$0xff]
    %v1015 = vld [vmem:[#allocation11 + $0x38] sm:$0xff]
    %v1016 = vld [vmem:[#allocation11 + $0x40] sm:$0xff]
    %v1017 = vld [vmem:[#allocation11 + $0x48] sm:$0xff]
    %v1018 = vld [vmem:[#allocation11 + $0x50] sm:$0xff]
    %v1019 = vld [vmem:[#allocation11 + $0x58] sm:$0xff]
    %v1020 = vld [vmem:[#allocation11 + $0x60] sm:$0xff]
    %v1021 = vld [vmem:[#allocation11 + $0x68] sm:$0xff]
    %v1022 = vld [vmem:[#allocation11 + $0x70] sm:$0xff]
    %v1023 = vld [vmem:[#allocation11 + $0x78] sm:$0xff]
    %v1024 = vld [vmem:[#allocation11 + $0x80] sm:$0xff]
    %v1025 = vld [vmem:[#allocation11 + $0x88] sm:$0xff]
    %v1026 = vld [vmem:[#allocation11 + $0x90] sm:$0xff]
    %v1027 = vld [vmem:[#allocation11 + $0x98] sm:$0xff]
    %v1028 = vld [vmem:[#allocation11 + $0xa0] sm:$0xff]
    %v1029 = vld [vmem:[#allocation11 + $0xa8] sm:$0xff]
    %v1030 = vld [vmem:[#allocation11 + $0xb0] sm:$0xff]
    %v1031 = vld [vmem:[#allocation11 + $0xb8] sm:$0xff]
    %v1032 = vld [vmem:[#allocation11 + $0xc0] sm:$0xff]
    %v1033 = vld [vmem:[#allocation11 + $0xc8] sm:$0xff]
    %v1034 = vld [vmem:[#allocation11 + $0xd0] sm:$0xff]
    %v1035 = vld [vmem:[#allocation11 + $0xd8] sm:$0xff]
    %v1036 = vld [vmem:[#allocation11 + $0xe0] sm:$0xff]
    %v1037 = vld [vmem:[#allocation11 + $0xe8] sm:$0xff]
    %v1038 = vld [vmem:[#allocation11 + $0xf0] sm:$0xff]
    %v1039 = vld [vmem:[#allocation11 + $0xf8] sm:$0xff]
    %v1040 = vld [vmem:[%s10] sm:$0x3]
    %v1041 = vpack.c.bf16 %v1002, %v1002
    %v1042 = vpack.c.bf16 %v1004, %v1004
    %v1044 = vlaneseq
    %v1045 = vshrl.u32 %v1044, 7
    %v1046 = vsub.s32 0, %v1045
    %v1047 = vrot.slane %v1040, %v1046
    %v1048 = vlaneseq
    %v1049 = vshrl.u32 %v1048, 7
    %v1050 = vsub.s32 1, %v1049
    %v1051 = vrot.slane %v1040, %v1050
    %v1086 = vunpack.c.l.b16 %v1008
    %v1087 = vunpack.c.h.b16 %v1008
    %v1088 = vunpack.c.l.b16 %v1009
    %v1089 = vunpack.c.h.b16 %v1009
    %v1090 = vunpack.c.l.b16 %v1010
    %v1091 = vunpack.c.h.b16 %v1010
    %v1092 = vunpack.c.l.b16 %v1011
    %v1093 = vunpack.c.h.b16 %v1011
    %v1094 = vunpack.c.l.b16 %v1012
    %v1095 = vunpack.c.h.b16 %v1012
    %v1096 = vunpack.c.l.b16 %v1013
    %v1097 = vunpack.c.h.b16 %v1013
    %v1098 = vunpack.c.l.b16 %v1014
    %v1099 = vunpack.c.h.b16 %v1014
    %v1100 = vunpack.c.l.b16 %v1015
    %v1101 = vunpack.c.h.b16 %v1015
    %v1102 = vunpack.c.l.b16 %v1016
    %v1103 = vunpack.c.h.b16 %v1016
    %v1104 = vunpack.c.l.b16 %v1017
    %v1105 = vunpack.c.h.b16 %v1017
    %v1106 = vunpack.c.l.b16 %v1018
    %v1107 = vunpack.c.h.b16 %v1018
    %v1108 = vunpack.c.l.b16 %v1019
    %v1109 = vunpack.c.h.b16 %v1019
    %v1110 = vunpack.c.l.b16 %v1020
    %v1111 = vunpack.c.h.b16 %v1020
    %v1112 = vunpack.c.l.b16 %v1021
    %v1113 = vunpack.c.h.b16 %v1021
    %v1114 = vunpack.c.l.b16 %v1022
    %v1115 = vunpack.c.h.b16 %v1022
    %v1116 = vunpack.c.l.b16 %v1023
    %v1117 = vunpack.c.h.b16 %v1023
    %v1118 = vunpack.c.l.b16 %v1024
    %v1119 = vunpack.c.h.b16 %v1024
    %v1120 = vunpack.c.l.b16 %v1025
    %v1121 = vunpack.c.h.b16 %v1025
    %v1122 = vunpack.c.l.b16 %v1026
    %v1123 = vunpack.c.h.b16 %v1026
    %v1124 = vunpack.c.l.b16 %v1027
    %v1125 = vunpack.c.h.b16 %v1027
    %v1126 = vunpack.c.l.b16 %v1028
    %v1127 = vunpack.c.h.b16 %v1028
    %v1128 = vunpack.c.l.b16 %v1029
    %v1129 = vunpack.c.h.b16 %v1029
    %v1130 = vunpack.c.l.b16 %v1030
    %v1131 = vunpack.c.h.b16 %v1030
    %v1132 = vunpack.c.l.b16 %v1031
    %v1133 = vunpack.c.h.b16 %v1031
    %v1134 = vunpack.c.l.b16 %v1032
    %v1135 = vunpack.c.h.b16 %v1032
    %v1136 = vunpack.c.l.b16 %v1033
    %v1137 = vunpack.c.h.b16 %v1033
    %v1138 = vunpack.c.l.b16 %v1034
    %v1139 = vunpack.c.h.b16 %v1034
    %v1140 = vunpack.c.l.b16 %v1035
    %v1141 = vunpack.c.h.b16 %v1035
    %v1142 = vunpack.c.l.b16 %v1036
    %v1143 = vunpack.c.h.b16 %v1036
    %v1144 = vunpack.c.l.b16 %v1037
    %v1145 = vunpack.c.h.b16 %v1037
    %v1146 = vunpack.c.l.b16 %v1038
    %v1147 = vunpack.c.h.b16 %v1038
    %v1148 = vunpack.c.l.b16 %v1039
    %v1149 = vunpack.c.h.b16 %v1039
    %v1150 = vpack.c.b16 %v1088, %v1086
    %v1151 = vpack.c.b16 %v1089, %v1087
    %v1152 = vpack.c.b16 %v1092, %v1090
    %v1153 = vpack.c.b16 %v1093, %v1091
    %v1154 = vpack.c.b16 %v1096, %v1094
    %v1155 = vpack.c.b16 %v1097, %v1095
    %v1156 = vpack.c.b16 %v1100, %v1098
    %v1157 = vpack.c.b16 %v1101, %v1099
    %v1158 = vpack.c.b16 %v1104, %v1102
    %v1159 = vpack.c.b16 %v1105, %v1103
    %v1160 = vpack.c.b16 %v1108, %v1106
    %v1161 = vpack.c.b16 %v1109, %v1107
    %v1162 = vpack.c.b16 %v1112, %v1110
    %v1163 = vpack.c.b16 %v1113, %v1111
    %v1164 = vpack.c.b16 %v1116, %v1114
    %v1165 = vpack.c.b16 %v1117, %v1115
    %v1166 = vpack.c.b16 %v1120, %v1118
    %v1167 = vpack.c.b16 %v1121, %v1119
    %v1168 = vpack.c.b16 %v1124, %v1122
    %v1169 = vpack.c.b16 %v1125, %v1123
    %v1170 = vpack.c.b16 %v1128, %v1126
    %v1171 = vpack.c.b16 %v1129, %v1127
    %v1172 = vpack.c.b16 %v1132, %v1130
    %v1173 = vpack.c.b16 %v1133, %v1131
    %v1174 = vpack.c.b16 %v1136, %v1134
    %v1175 = vpack.c.b16 %v1137, %v1135
    %v1176 = vpack.c.b16 %v1140, %v1138
    %v1177 = vpack.c.b16 %v1141, %v1139
    %v1178 = vpack.c.b16 %v1144, %v1142
    %v1179 = vpack.c.b16 %v1145, %v1143
    %v1180 = vpack.c.b16 %v1148, %v1146
    %v1181 = vpack.c.b16 %v1149, %v1147
    %1214 = vmatprep.subr.bf16.mxu0 %v1151
    %1215 = vmatpush1.bf16.msra.mxu0 %v1150
    %1216 = vmatprep.subr.bf16.mxu0 %v1153
    %1217 = vmatpush1.bf16.msra.mxu0 %v1152
    %1218 = vmatprep.subr.bf16.mxu0 %v1155
    %1219 = vmatpush1.bf16.msra.mxu0 %v1154
    %1220 = vmatprep.subr.bf16.mxu0 %v1157
    %1221 = vmatpush1.bf16.msra.mxu0 %v1156
    %1222 = vmatprep.subr.bf16.mxu0 %v1159
    %1223 = vmatpush1.bf16.msra.mxu0 %v1158
    %1224 = vmatprep.subr.bf16.mxu0 %v1161
    %1225 = vmatpush1.bf16.msra.mxu0 %v1160
    %1226 = vmatprep.subr.bf16.mxu0 %v1163
    %1227 = vmatpush1.bf16.msra.mxu0 %v1162
    %1228 = vmatprep.subr.bf16.mxu0 %v1165
    %1229 = vmatpush1.bf16.msra.mxu0 %v1164
    %1230 = vmatprep.subr.bf16.mxu0 %v1167
    %1231 = vmatpush1.bf16.msra.mxu0 %v1166
    %1232 = vmatprep.subr.bf16.mxu0 %v1169
    %1233 = vmatpush1.bf16.msra.mxu0 %v1168
    %1234 = vmatprep.subr.bf16.mxu0 %v1171
    %1235 = vmatpush1.bf16.msra.mxu0 %v1170
    %1236 = vmatprep.subr.bf16.mxu0 %v1173
    %1237 = vmatpush1.bf16.msra.mxu0 %v1172
    %1238 = vmatprep.subr.bf16.mxu0 %v1175
    %1239 = vmatpush1.bf16.msra.mxu0 %v1174
    %1240 = vmatprep.subr.bf16.mxu0 %v1177
    %1241 = vmatpush1.bf16.msra.mxu0 %v1176
    %1242 = vmatprep.subr.bf16.mxu0 %v1179
    %1243 = vmatpush1.bf16.msra.mxu0 %v1178
    %1244 = vmatprep.subr.bf16.mxu0 %v1181
    %1245 = vmatpush1.bf16.msra.mxu0 %v1180
    %1246 = vmatprep.mubr.bf16.mxu0 %v1042
    %1247 = vmatmul.mubr.bf16.gmra.mrb[0].mxu0 %v1041
    %v1248 = vpop.f32.mrb[0].mxu0
    %v1249 = vadd.f32 %v1047, %v1248
    %v1250 = vpop.f32.mrb[0].mxu0
    %v1251 = vadd.f32 %v1051, %v1250
    %v1252 = vpop.f32.mrb[0].mxu0
    %v1253 = vpop.f32.mrb[0].mxu0
    %1254 = vdwg.mxu0
    %v1255 = vmax.f32 %v1249, 0.0
    %v1256 = vmax.f32 %v1251, 0.0
    %v1257 = vld [vmem:[#allocation13] sm:$0xff]
    %v1258 = vld [vmem:[#allocation13 + $0x8] sm:$0xff]
    %v1259 = vld [vmem:[#allocation13 + $0x10] sm:$0xff]
    %v1260 = vld [vmem:[#allocation13 + $0x18] sm:$0xff]
    %v1261 = vld [vmem:[#allocation13 + $0x20] sm:$0xff]
    %v1262 = vld [vmem:[#allocation13 + $0x28] sm:$0xff]
    %v1263 = vld [vmem:[#allocation13 + $0x30] sm:$0xff]
    %v1264 = vld [vmem:[#allocation13 + $0x38] sm:$0xff]
    %v1265 = vld [vmem:[#allocation13 + $0x40] sm:$0xff]
    %v1266 = vld [vmem:[#allocation13 + $0x48] sm:$0xff]
    %v1267 = vld [vmem:[#allocation13 + $0x50] sm:$0xff]
    %v1268 = vld [vmem:[#allocation13 + $0x58] sm:$0xff]
    %v1269 = vld [vmem:[#allocation13 + $0x60] sm:$0xff]
    %v1270 = vld [vmem:[#allocation13 + $0x68] sm:$0xff]
    %v1271 = vld [vmem:[#allocation13 + $0x70] sm:$0xff]
    %v1272 = vld [vmem:[#allocation13 + $0x78] sm:$0xff]
    %v1273 = vld [vmem:[#allocation13 + $0x80] sm:$0xff]
    %v1274 = vld [vmem:[#allocation13 + $0x88] sm:$0xff]
    %v1275 = vld [vmem:[#allocation13 + $0x90] sm:$0xff]
    %v1276 = vld [vmem:[#allocation13 + $0x98] sm:$0xff]
    %v1277 = vld [vmem:[#allocation13 + $0xa0] sm:$0xff]
    %v1278 = vld [vmem:[#allocation13 + $0xa8] sm:$0xff]
    %v1279 = vld [vmem:[#allocation13 + $0xb0] sm:$0xff]
    %v1280 = vld [vmem:[#allocation13 + $0xb8] sm:$0xff]
    %v1281 = vld [vmem:[#allocation13 + $0xc0] sm:$0xff]
    %v1282 = vld [vmem:[#allocation13 + $0xc8] sm:$0xff]
    %v1283 = vld [vmem:[#allocation13 + $0xd0] sm:$0xff]
    %v1284 = vld [vmem:[#allocation13 + $0xd8] sm:$0xff]
    %v1285 = vld [vmem:[#allocation13 + $0xe0] sm:$0xff]
    %v1286 = vld [vmem:[#allocation13 + $0xe8] sm:$0xff]
    %v1287 = vld [vmem:[#allocation13 + $0xf0] sm:$0xff]
    %v1288 = vld [vmem:[#allocation13 + $0xf8] sm:$0xff]
    %v1289 = vld [vmem:[%s12] sm:$0x3]
    %v1290 = vpack.c.bf16 %v1255, %v1255
    %v1291 = vpack.c.bf16 %v1256, %v1256
    %v1293 = vlaneseq
    %v1294 = vshrl.u32 %v1293, 7
    %v1295 = vsub.s32 0, %v1294
    %v1296 = vrot.slane %v1289, %v1295
    %v1297 = vlaneseq
    %v1298 = vshrl.u32 %v1297, 7
    %v1299 = vsub.s32 1, %v1298
    %v1300 = vrot.slane %v1289, %v1299
    %v1335 = vunpack.c.l.b16 %v1257
    %v1336 = vunpack.c.h.b16 %v1257
    %v1337 = vunpack.c.l.b16 %v1258
    %v1338 = vunpack.c.h.b16 %v1258
    %v1339 = vunpack.c.l.b16 %v1259
    %v1340 = vunpack.c.h.b16 %v1259
    %v1341 = vunpack.c.l.b16 %v1260
    %v1342 = vunpack.c.h.b16 %v1260
    %v1343 = vunpack.c.l.b16 %v1261
    %v1344 = vunpack.c.h.b16 %v1261
    %v1345 = vunpack.c.l.b16 %v1262
    %v1346 = vunpack.c.h.b16 %v1262
    %v1347 = vunpack.c.l.b16 %v1263
    %v1348 = vunpack.c.h.b16 %v1263
    %v1349 = vunpack.c.l.b16 %v1264
    %v1350 = vunpack.c.h.b16 %v1264
    %v1351 = vunpack.c.l.b16 %v1265
    %v1352 = vunpack.c.h.b16 %v1265
    %v1353 = vunpack.c.l.b16 %v1266
    %v1354 = vunpack.c.h.b16 %v1266
    %v1355 = vunpack.c.l.b16 %v1267
    %v1356 = vunpack.c.h.b16 %v1267
    %v1357 = vunpack.c.l.b16 %v1268
    %v1358 = vunpack.c.h.b16 %v1268
    %v1359 = vunpack.c.l.b16 %v1269
    %v1360 = vunpack.c.h.b16 %v1269
    %v1361 = vunpack.c.l.b16 %v1270
    %v1362 = vunpack.c.h.b16 %v1270
    %v1363 = vunpack.c.l.b16 %v1271
    %v1364 = vunpack.c.h.b16 %v1271
    %v1365 = vunpack.c.l.b16 %v1272
    %v1366 = vunpack.c.h.b16 %v1272
    %v1367 = vunpack.c.l.b16 %v1273
    %v1368 = vunpack.c.h.b16 %v1273
    %v1369 = vunpack.c.l.b16 %v1274
    %v1370 = vunpack.c.h.b16 %v1274
    %v1371 = vunpack.c.l.b16 %v1275
    %v1372 = vunpack.c.h.b16 %v1275
    %v1373 = vunpack.c.l.b16 %v1276
    %v1374 = vunpack.c.h.b16 %v1276
    %v1375 = vunpack.c.l.b16 %v1277
    %v1376 = vunpack.c.h.b16 %v1277
    %v1377 = vunpack.c.l.b16 %v1278
    %v1378 = vunpack.c.h.b16 %v1278
    %v1379 = vunpack.c.l.b16 %v1279
    %v1380 = vunpack.c.h.b16 %v1279
    %v1381 = vunpack.c.l.b16 %v1280
    %v1382 = vunpack.c.h.b16 %v1280
    %v1383 = vunpack.c.l.b16 %v1281
    %v1384 = vunpack.c.h.b16 %v1281
    %v1385 = vunpack.c.l.b16 %v1282
    %v1386 = vunpack.c.h.b16 %v1282
    %v1387 = vunpack.c.l.b16 %v1283
    %v1388 = vunpack.c.h.b16 %v1283
    %v1389 = vunpack.c.l.b16 %v1284
    %v1390 = vunpack.c.h.b16 %v1284
    %v1391 = vunpack.c.l.b16 %v1285
    %v1392 = vunpack.c.h.b16 %v1285
    %v1393 = vunpack.c.l.b16 %v1286
    %v1394 = vunpack.c.h.b16 %v1286
    %v1395 = vunpack.c.l.b16 %v1287
    %v1396 = vunpack.c.h.b16 %v1287
    %v1397 = vunpack.c.l.b16 %v1288
    %v1398 = vunpack.c.h.b16 %v1288
    %v1399 = vpack.c.b16 %v1337, %v1335
    %v1400 = vpack.c.b16 %v1338, %v1336
    %v1401 = vpack.c.b16 %v1341, %v1339
    %v1402 = vpack.c.b16 %v1342, %v1340
    %v1403 = vpack.c.b16 %v1345, %v1343
    %v1404 = vpack.c.b16 %v1346, %v1344
    %v1405 = vpack.c.b16 %v1349, %v1347
    %v1406 = vpack.c.b16 %v1350, %v1348
    %v1407 = vpack.c.b16 %v1353, %v1351
    %v1408 = vpack.c.b16 %v1354, %v1352
    %v1409 = vpack.c.b16 %v1357, %v1355
    %v1410 = vpack.c.b16 %v1358, %v1356
    %v1411 = vpack.c.b16 %v1361, %v1359
    %v1412 = vpack.c.b16 %v1362, %v1360
    %v1413 = vpack.c.b16 %v1365, %v1363
    %v1414 = vpack.c.b16 %v1366, %v1364
    %v1415 = vpack.c.b16 %v1369, %v1367
    %v1416 = vpack.c.b16 %v1370, %v1368
    %v1417 = vpack.c.b16 %v1373, %v1371
    %v1418 = vpack.c.b16 %v1374, %v1372
    %v1419 = vpack.c.b16 %v1377, %v1375
    %v1420 = vpack.c.b16 %v1378, %v1376
    %v1421 = vpack.c.b16 %v1381, %v1379
    %v1422 = vpack.c.b16 %v1382, %v1380
    %v1423 = vpack.c.b16 %v1385, %v1383
    %v1424 = vpack.c.b16 %v1386, %v1384
    %v1425 = vpack.c.b16 %v1389, %v1387
    %v1426 = vpack.c.b16 %v1390, %v1388
    %v1427 = vpack.c.b16 %v1393, %v1391
    %v1428 = vpack.c.b16 %v1394, %v1392
    %v1429 = vpack.c.b16 %v1397, %v1395
    %v1430 = vpack.c.b16 %v1398, %v1396
    %1463 = vmatprep.subr.bf16.mxu0 %v1400
    %1464 = vmatpush1.bf16.msra.mxu0 %v1399
    %1465 = vmatprep.subr.bf16.mxu0 %v1402
    %1466 = vmatpush1.bf16.msra.mxu0 %v1401
    %1467 = vmatprep.subr.bf16.mxu0 %v1404
    %1468 = vmatpush1.bf16.msra.mxu0 %v1403
    %1469 = vmatprep.subr.bf16.mxu0 %v1406
    %1470 = vmatpush1.bf16.msra.mxu0 %v1405
    %1471 = vmatprep.subr.bf16.mxu0 %v1408
    %1472 = vmatpush1.bf16.msra.mxu0 %v1407
    %1473 = vmatprep.subr.bf16.mxu0 %v1410
    %1474 = vmatpush1.bf16.msra.mxu0 %v1409
    %1475 = vmatprep.subr.bf16.mxu0 %v1412
    %1476 = vmatpush1.bf16.msra.mxu0 %v1411
    %1477 = vmatprep.subr.bf16.mxu0 %v1414
    %1478 = vmatpush1.bf16.msra.mxu0 %v1413
    %1479 = vmatprep.subr.bf16.mxu0 %v1416
    %1480 = vmatpush1.bf16.msra.mxu0 %v1415
    %1481 = vmatprep.subr.bf16.mxu0 %v1418
    %1482 = vmatpush1.bf16.msra.mxu0 %v1417
    %1483 = vmatprep.subr.bf16.mxu0 %v1420
    %1484 = vmatpush1.bf16.msra.mxu0 %v1419
    %1485 = vmatprep.subr.bf16.mxu0 %v1422
    %1486 = vmatpush1.bf16.msra.mxu0 %v1421
    %1487 = vmatprep.subr.bf16.mxu0 %v1424
    %1488 = vmatpush1.bf16.msra.mxu0 %v1423
    %1489 = vmatprep.subr.bf16.mxu0 %v1426
    %1490 = vmatpush1.bf16.msra.mxu0 %v1425
    %1491 = vmatprep.subr.bf16.mxu0 %v1428
    %1492 = vmatpush1.bf16.msra.mxu0 %v1427
    %1493 = vmatprep.subr.bf16.mxu0 %v1430
    %1494 = vmatpush1.bf16.msra.mxu0 %v1429
    %1495 = vmatprep.mubr.bf16.mxu0 %v1291
    %1496 = vmatmul.mubr.bf16.gmra.mrb[0].mxu0 %v1290
    %v1497 = vpop.f32.mrb[0].mxu0
    %v1498 = vadd.f32 %v1296, %v1497
    %v1499 = vpop.f32.mrb[0].mxu0
    %v1500 = vadd.f32 %v1300, %v1499
    %v1501 = vpop.f32.mrb[0].mxu0
    %v1502 = vpop.f32.mrb[0].mxu0
    %1503 = vdwg.mxu0
    %v1504 = vmax.f32 %v1498, 0.0
    %v1505 = vmax.f32 %v1500, 0.0
    %v1506 = vadd.f32 %v1002, %v1504
    %v1507 = vadd.f32 %v1004, %v1505
    %v1508 = vld [vmem:[#allocation14] sm:$0xf]
    %v1509 = vld [vmem:[#allocation14 + $0x4] sm:$0xf]
    %v1510 = vld [vmem:[#allocation14 + $0x8] sm:$0xf]
    %v1511 = vld [vmem:[#allocation14 + $0xc] sm:$0xf]
    %v1512 = vld [vmem:[#allocation14 + $0x10] sm:$0xf]
    %v1513 = vld [vmem:[#allocation14 + $0x14] sm:$0xf]
    %v1514 = vld [vmem:[#allocation14 + $0x18] sm:$0xf]
    %v1515 = vld [vmem:[#allocation14 + $0x1c] sm:$0xf]
    %v1516 = vld [vmem:[#allocation14 + $0x20] sm:$0xf]
    %v1517 = vld [vmem:[#allocation14 + $0x24] sm:$0xf]
    %v1518 = vld [vmem:[#allocation14 + $0x28] sm:$0xf]
    %v1519 = vld [vmem:[#allocation14 + $0x2c] sm:$0xf]
    %v1520 = vld [vmem:[#allocation14 + $0x30] sm:$0xf]
    %v1521 = vld [vmem:[#allocation14 + $0x34] sm:$0xf]
    %v1522 = vld [vmem:[#allocation14 + $0x38] sm:$0xf]
    %v1523 = vld [vmem:[#allocation14 + $0x3c] sm:$0xf]
    %v1524 = vld [vmem:[#allocation14 + $0x40] sm:$0xf]
    %v1525 = vld [vmem:[#allocation14 + $0x44] sm:$0xf]
    %v1526 = vld [vmem:[#allocation14 + $0x48] sm:$0xf]
    %v1527 = vld [vmem:[#allocation14 + $0x4c] sm:$0xf]
    %v1528 = vld [vmem:[#allocation14 + $0x50] sm:$0xf]
    %v1529 = vld [vmem:[#allocation14 + $0x54] sm:$0xf]
    %v1530 = vld [vmem:[#allocation14 + $0x58] sm:$0xf]
    %v1531 = vld [vmem:[#allocation14 + $0x5c] sm:$0xf]
    %v1532 = vld [vmem:[#allocation14 + $0x60] sm:$0xf]
    %v1533 = vld [vmem:[#allocation14 + $0x64] sm:$0xf]
    %v1534 = vld [vmem:[#allocation14 + $0x68] sm:$0xf]
    %v1535 = vld [vmem:[#allocation14 + $0x6c] sm:$0xf]
    %v1536 = vld [vmem:[#allocation14 + $0x70] sm:$0xf]
    %v1537 = vld [vmem:[#allocation14 + $0x74] sm:$0xf]
    %v1538 = vld [vmem:[#allocation14 + $0x78] sm:$0xf]
    %v1539 = vld [vmem:[#allocation14 + $0x7c] sm:$0xf]
    %v1540 = vld [vmem:[%s14] sm:$0x1]
    %v1541 = vpack.c.bf16 %v1506, %v1506
    %v1542 = vpack.c.bf16 %v1507, %v1507
    %v1544 = vlaneseq
    %v1545 = vshrl.u32 %v1544, 7
    %v1546 = vsub.s32 0, %v1545
    %v1547 = vrot.slane %v1540, %v1546
    %v1581 = vunpack.c.l.b16 %v1508
    %v1582 = vunpack.c.l.b16 %v1509
    %v1583 = vunpack.c.l.b16 %v1510
    %v1584 = vunpack.c.l.b16 %v1511
    %v1585 = vunpack.c.l.b16 %v1512
    %v1586 = vunpack.c.l.b16 %v1513
    %v1587 = vunpack.c.l.b16 %v1514
    %v1588 = vunpack.c.l.b16 %v1515
    %v1589 = vunpack.c.l.b16 %v1516
    %v1590 = vunpack.c.l.b16 %v1517
    %v1591 = vunpack.c.l.b16 %v1518
    %v1592 = vunpack.c.l.b16 %v1519
    %v1593 = vunpack.c.l.b16 %v1520
    %v1594 = vunpack.c.l.b16 %v1521
    %v1595 = vunpack.c.l.b16 %v1522
    %v1596 = vunpack.c.l.b16 %v1523
    %v1597 = vunpack.c.l.b16 %v1524
    %v1598 = vunpack.c.l.b16 %v1525
    %v1599 = vunpack.c.l.b16 %v1526
    %v1600 = vunpack.c.l.b16 %v1527
    %v1601 = vunpack.c.l.b16 %v1528
    %v1602 = vunpack.c.l.b16 %v1529
    %v1603 = vunpack.c.l.b16 %v1530
    %v1604 = vunpack.c.l.b16 %v1531
    %v1605 = vunpack.c.l.b16 %v1532
    %v1606 = vunpack.c.l.b16 %v1533
    %v1607 = vunpack.c.l.b16 %v1534
    %v1608 = vunpack.c.l.b16 %v1535
    %v1609 = vunpack.c.l.b16 %v1536
    %v1610 = vunpack.c.l.b16 %v1537
    %v1611 = vunpack.c.l.b16 %v1538
    %v1612 = vunpack.c.l.b16 %v1539
    %v1613 = vpack.c.b16 %v1582, %v1581
    %v1614 = vpack.c.b16 %v1584, %v1583
    %v1615 = vpack.c.b16 %v1586, %v1585
    %v1616 = vpack.c.b16 %v1588, %v1587
    %v1617 = vpack.c.b16 %v1590, %v1589
    %v1618 = vpack.c.b16 %v1592, %v1591
    %v1619 = vpack.c.b16 %v1594, %v1593
    %v1620 = vpack.c.b16 %v1596, %v1595
    %v1621 = vpack.c.b16 %v1598, %v1597
    %v1622 = vpack.c.b16 %v1600, %v1599
    %v1623 = vpack.c.b16 %v1602, %v1601
    %v1624 = vpack.c.b16 %v1604, %v1603
    %v1625 = vpack.c.b16 %v1606, %v1605
    %v1626 = vpack.c.b16 %v1608, %v1607
    %v1627 = vpack.c.b16 %v1610, %v1609
    %v1628 = vpack.c.b16 %v1612, %v1611
    %1645 = vmatprep.subr.bf16.mxu0 0
    %1646 = vmatpush1.bf16.msra.mxu0 %v1613
    %1647 = vmatprep.subr.bf16.mxu0 0
    %1648 = vmatpush1.bf16.msra.mxu0 %v1614
    %1649 = vmatprep.subr.bf16.mxu0 0
    %1650 = vmatpush1.bf16.msra.mxu0 %v1615
    %1651 = vmatprep.subr.bf16.mxu0 0
    %1652 = vmatpush1.bf16.msra.mxu0 %v1616
    %1653 = vmatprep.subr.bf16.mxu0 0
    %1654 = vmatpush1.bf16.msra.mxu0 %v1617
    %1655 = vmatprep.subr.bf16.mxu0 0
    %1656 = vmatpush1.bf16.msra.mxu0 %v1618
    %1657 = vmatprep.subr.bf16.mxu0 0
    %1658 = vmatpush1.bf16.msra.mxu0 %v1619
    %1659 = vmatprep.subr.bf16.mxu0 0
    %1660 = vmatpush1.bf16.msra.mxu0 %v1620
    %1661 = vmatprep.subr.bf16.mxu0 0
    %1662 = vmatpush1.bf16.msra.mxu0 %v1621
    %1663 = vmatprep.subr.bf16.mxu0 0
    %1664 = vmatpush1.bf16.msra.mxu0 %v1622
    %1665 = vmatprep.subr.bf16.mxu0 0
    %1666 = vmatpush1.bf16.msra.mxu0 %v1623
    %1667 = vmatprep.subr.bf16.mxu0 0
    %1668 = vmatpush1.bf16.msra.mxu0 %v1624
    %1669 = vmatprep.subr.bf16.mxu0 0
    %1670 = vmatpush1.bf16.msra.mxu0 %v1625
    %1671 = vmatprep.subr.bf16.mxu0 0
    %1672 = vmatpush1.bf16.msra.mxu0 %v1626
    %1673 = vmatprep.subr.bf16.mxu0 0
    %1674 = vmatpush1.bf16.msra.mxu0 %v1627
    %1675 = vmatprep.subr.bf16.mxu0 0
    %1676 = vmatpush1.bf16.msra.mxu0 %v1628
    %1677 = vmatprep.mubr.bf16.mxu0 %v1542
    %1678 = vmatmul.mubr.bf16.gmra.mrb[0].mxu0 %v1541
    %v1679 = vpop.f32.mrb[0].mxu0
    %v1680 = vadd.f32 %v1547, %v1679
    %v1681 = vpop.f32.mrb[0].mxu0
    %v1682 = vpop.f32.mrb[0].mxu0
    %v1683 = vpop.f32.mrb[0].mxu0
    %1684 = vdwg.mxu0
    %v1685 = vmax.f32 %v1680, 0.0
    %v1686 = vld [vmem:[#allocation16] sm:$0xf]
    %v1687 = vld [vmem:[#allocation16 + $0x4] sm:$0xf]
    %v1688 = vld [vmem:[#allocation16 + $0x8] sm:$0xf]
    %v1689 = vld [vmem:[#allocation16 + $0xc] sm:$0xf]
    %v1690 = vld [vmem:[#allocation16 + $0x10] sm:$0xf]
    %v1691 = vld [vmem:[#allocation16 + $0x14] sm:$0xf]
    %v1692 = vld [vmem:[#allocation16 + $0x18] sm:$0xf]
    %v1693 = vld [vmem:[#allocation16 + $0x1c] sm:$0xf]
    %v1694 = vld [vmem:[#allocation16 + $0x20] sm:$0xf]
    %v1695 = vld [vmem:[#allocation16 + $0x24] sm:$0xf]
    %v1696 = vld [vmem:[#allocation16 + $0x28] sm:$0xf]
    %v1697 = vld [vmem:[#allocation16 + $0x2c] sm:$0xf]
    %v1698 = vld [vmem:[#allocation16 + $0x30] sm:$0xf]
    %v1699 = vld [vmem:[#allocation16 + $0x34] sm:$0xf]
    %v1700 = vld [vmem:[#allocation16 + $0x38] sm:$0xf]
    %v1701 = vld [vmem:[#allocation16 + $0x3c] sm:$0xf]
    %v1702 = vld [vmem:[%s16] sm:$0x1]
    %v1703 = vpack.c.bf16 %v1685, %v1685
    %v1705 = vlaneseq
    %v1706 = vshrl.u32 %v1705, 7
    %v1707 = vsub.s32 0, %v1706
    %v1708 = vrot.slane %v1702, %v1707
    %v1726 = vunpack.c.l.b16 %v1686
    %v1727 = vunpack.c.l.b16 %v1687
    %v1728 = vunpack.c.l.b16 %v1688
    %v1729 = vunpack.c.l.b16 %v1689
    %v1730 = vunpack.c.l.b16 %v1690
    %v1731 = vunpack.c.l.b16 %v1691
    %v1732 = vunpack.c.l.b16 %v1692
    %v1733 = vunpack.c.l.b16 %v1693
    %v1734 = vunpack.c.l.b16 %v1694
    %v1735 = vunpack.c.l.b16 %v1695
    %v1736 = vunpack.c.l.b16 %v1696
    %v1737 = vunpack.c.l.b16 %v1697
    %v1738 = vunpack.c.l.b16 %v1698
    %v1739 = vunpack.c.l.b16 %v1699
    %v1740 = vunpack.c.l.b16 %v1700
    %v1741 = vunpack.c.l.b16 %v1701
    %v1742 = vpack.c.b16 %v1727, %v1726
    %v1743 = vpack.c.b16 %v1729, %v1728
    %v1744 = vpack.c.b16 %v1731, %v1730
    %v1745 = vpack.c.b16 %v1733, %v1732
    %v1746 = vpack.c.b16 %v1735, %v1734
    %v1747 = vpack.c.b16 %v1737, %v1736
    %v1748 = vpack.c.b16 %v1739, %v1738
    %v1749 = vpack.c.b16 %v1741, %v1740
    %1758 = vmatprep.subr.bf16.mxu0 0
    %1759 = vmatpush1.bf16.msra.mxu0 %v1742
    %1760 = vmatprep.subr.bf16.mxu0 0
    %1761 = vmatpush1.bf16.msra.mxu0 %v1743
    %1762 = vmatprep.subr.bf16.mxu0 0
    %1763 = vmatpush1.bf16.msra.mxu0 %v1744
    %1764 = vmatprep.subr.bf16.mxu0 0
    %1765 = vmatpush1.bf16.msra.mxu0 %v1745
    %1766 = vmatprep.subr.bf16.mxu0 0
    %1767 = vmatpush1.bf16.msra.mxu0 %v1746
    %1768 = vmatprep.subr.bf16.mxu0 0
    %1769 = vmatpush1.bf16.msra.mxu0 %v1747
    %1770 = vmatprep.subr.bf16.mxu0 0
    %1771 = vmatpush1.bf16.msra.mxu0 %v1748
    %1772 = vmatprep.subr.bf16.mxu0 0
    %1773 = vmatpush1.bf16.msra.mxu0 %v1749
    %1774 = vmatprep.subr.bf16.mxu0 0
    %1775 = vmatpush1.bf16.msra.mxu0 0
    %1776 = vmatprep.subr.bf16.mxu0 0
    %1777 = vmatpush1.bf16.msra.mxu0 0
    %1778 = vmatprep.subr.bf16.mxu0 0
    %1779 = vmatpush1.bf16.msra.mxu0 0
    %1780 = vmatprep.subr.bf16.mxu0 0
    %1781 = vmatpush1.bf16.msra.mxu0 0
    %1782 = vmatprep.subr.bf16.mxu0 0
    %1783 = vmatpush1.bf16.msra.mxu0 0
    %1784 = vmatprep.subr.bf16.mxu0 0
    %1785 = vmatpush1.bf16.msra.mxu0 0
    %1786 = vmatprep.subr.bf16.mxu0 0
    %1787 = vmatpush1.bf16.msra.mxu0 0
    %1788 = vmatprep.subr.bf16.mxu0 0
    %1789 = vmatpush1.bf16.msra.mxu0 0
    %1790 = vmatprep.mubr.bf16.mxu0 0
    %1791 = vmatmul.mubr.bf16.gmra.mrb[0].mxu0 %v1703
    %v1792 = vpop.f32.mrb[0].mxu0
    %v1793 = vadd.f32 %v1708, %v1792
    %v1794 = vpop.f32.mrb[0].mxu0
    %v1795 = vpop.f32.mrb[0].mxu0
    %v1796 = vpop.f32.mrb[0].mxu0
    %1797 = vdwg.mxu0
    %1798 = vst [vmem:[#allocation17] sm:$0xff] %v1793
    // Predicated region
    $region106: #{tpu_custom_call.1} parent=1 // pred_check
      _
    $region107: #{tpu_custom_call.1} parent=1 // pred_check_branch
      %1800 = sbr.rel (0) target = $region109
    $region108: #{tpu_custom_call.1} parent=1 // pred_region
      %s1802 = ssub.s32 128, 128
      %1803 = vsyncadd [#allocation4], %s1802
      %s1805 = sshll.u32 [#allocation17], 4
      %s1806 = int_to_ptr.vmem [resolvable:$true] %s1805
      %1808 = dma.vmem_to_hbm [thread:$0]  %s1806, 128, %s17, [#allocation4]
    $region109: #{tpu_custom_call.1} parent=1 // pred_fallthru
      _
    // Predicated region
    $region110: #{tpu_custom_call.1} parent=1 // pred_check
      _
    $region111: #{tpu_custom_call.1} parent=1 // pred_check_branch
      %1810 = sbr.rel (0) target = $region113
    $region112: #{tpu_custom_call.1} parent=1 // pred_region
      %1811 = dma.done [#allocation4], 128
    $region113: #{tpu_custom_call.1} parent=1 // pred_fallthru
      _
    %1812 = vsyncpa [#allocation3], 1
    %1813 = vsyncpa [#allocation6], 1
    %1814 = vsyncpa [#allocation9], 1
    %1815 = vsyncpa [#allocation12], 1
    %1816 = vsyncpa [#allocation15], 1
    %1817 = vsyncpa [#allocation4], 1

</llo_original>
